<compile_context>
chip_gen: v5e
topology: v5e:2x2
jax: 0.10.0
libtpu: 0.0.40
codegen_flags: <defaults>
</compile_context>

<pallas_src>
import functools
import math

import jax
import jax.numpy as jnp
from jax.experimental import pallas as pl
from jax.experimental.pallas import tpu as pltpu


# ---------------------------------------------------------------------------
# Fused kernel: embed + pos-enc + all transformer layers (+ optional classifier)
# ---------------------------------------------------------------------------
def _fused_encoder_kernel(nhead, num_layers, seq_len, batch_tile, classifier,
                          x_ref, embw_ref, embb_ref, pos_ref,
                          wqkv_ref, wo_ref, w1_ref, w2_ref, vecs_ref,
                          *rest):
    if classifier:
        wc_ref, bc_ref, o_ref, h_vmem = rest
    else:
        o_ref, h_vmem = rest

    layer = pl.program_id(1)                 # NOTE: layer MUST stay the minor, "arbitrary" axis
    M, D = h_vmem.shape                      # M = batch_tile * seq_len
    H = nhead
    Dh = D // H
    S = seq_len
    bt = batch_tile
    F = w1_ref.shape[2]
    scale = 1.0 / math.sqrt(Dh)
    eps = 1e-5
    cdt = wqkv_ref.dtype                     # MXU operand dtype (weights pre-cast in prepare)

    # ---- input embedding + positional encoding (first layer step only) ----
    @pl.when(layer == 0)
    def _():
        emb = x_ref[...] * embw_ref[...] + embb_ref[...]                      # (M, D)
        h_vmem[...] = (emb.reshape(bt, S, D) + pos_ref[...][None]).reshape(M, D)

    h = h_vmem[...]                          # (M, D) f32, resident across the layer sweep

    def layernorm(t, w, b):
        mu = jnp.mean(t, axis=-1, keepdims=True)
        var = jnp.mean((t - mu) * (t - mu), axis=-1, keepdims=True)           # biased, like torch
        return (t - mu) * jax.lax.rsqrt(var + eps) * w + b

    # ---- packed per-layer vectors: one DMA instead of ~10 ----
    vecs = vecs_ref[0]                                                        # (8, P) f32
    bqkv = vecs[0:1, :3 * D]
    b1   = vecs[1:2, :F]
    bo   = vecs[2:3, :D]
    b2   = vecs[3:4, :D]
    ln1w = vecs[4:5, :D]
    ln1b = vecs[5:6, :D]
    ln2w = vecs[6:7, :D]
    ln2b = vecs[7:8, :D]

    # ---- fused QKV projection: one lane-dense (M, D) x (D, 3D) matmul ----
    qkv = jnp.dot(h.astype(cdt), wqkv_ref[0],
                  preferred_element_type=jnp.float32) + bqkv                  # (M, 3D) f32
    qkv_c = qkv.astype(cdt)

    # ---- attention core: every matmul batched over the batch tile (3-D leading batch) ----
    # Heads are walked with a small static loop (H is tiny); the head split is a static lane
    # slice + leading-dim reshape, so no 4-D transposes are required in-kernel.
    ctx_parts = []
    for hh in range(H):
        qh = qkv_c[:, hh * Dh:(hh + 1) * Dh].reshape(bt, S, Dh)
        kh = qkv_c[:, D + hh * Dh: D + (hh + 1) * Dh].reshape(bt, S, Dh)
        vh = qkv_c[:, 2 * D + hh * Dh: 2 * D + (hh + 1) * Dh].reshape(bt, S, Dh)
        s = jax.lax.dot_general(qh, kh, (((2,), (2,)), ((0,), (0,))),
                                preferred_element_type=jnp.float32) * scale   # (bt, S, S) f32
        s = s - jnp.max(s, axis=-1, keepdims=True)
        p = jnp.exp(s)
        p = p * pl.reciprocal(jnp.sum(p, axis=-1, keepdims=True), approx=True)
        ch = jax.lax.dot_general(p.astype(cdt), vh, (((2,), (1,)), ((0,), (0,))),
                                 preferred_element_type=jnp.float32)          # (bt, S, Dh) f32
        ctx_parts.append(ch.reshape(M, Dh))
    ctx = ctx_parts[0] if H == 1 else jnp.concatenate(ctx_parts, axis=-1)     # (M, D), head-major

    # ---- output projection: single (M, D) x (D, D) matmul (head reduction in the MXU) ----
    attn = jnp.dot(ctx.astype(cdt), wo_ref[0],
                   preferred_element_type=jnp.float32) + bo                   # (M, D)

    x1 = layernorm(h + attn, ln1w, ln1b)

    # ---- feed-forward on the flattened (M, D) activation ----
    h1 = jnp.dot(x1.astype(cdt), w1_ref[0], preferred_element_type=jnp.float32) + b1
    h1 = jnp.maximum(h1, 0.0).astype(cdt)            # cast right after ReLU: halves (M,F) temp
    ff = jnp.dot(h1, w2_ref[0], preferred_element_type=jnp.float32) + b2

    out = layernorm(x1 + ff, ln2w, ln2b)
    h_vmem[...] = out

    # ---- write the result only after the last layer ----
    @pl.when(layer == num_layers - 1)
    def _():
        if classifier:
            pooled = jnp.mean(out.reshape(bt, S, D), axis=1)                  # sublane reduce
            logits = jnp.dot(pooled.astype(cdt), wc_ref[...],
                             preferred_element_type=jnp.float32) + bc_ref[...]
            o_ref[0] = logits                                                 # (bt, Cpad) lane-dense
        else:
            o_ref[0] = out                                                    # (M, D)


# ---------------------------------------------------------------------------
# One-time weight preparation (split / transpose / pack / pre-cast)
# ---------------------------------------------------------------------------
def prepare_params(params, nhead, mxu_dtype=jnp.bfloat16):
    """mxu_dtype: dtype of the matmul weight operands (bf16 is MXU-native on v5e/v6e/v7x);
    accumulation / LayerNorm / softmax / biases stay f32 in-kernel."""
    D = params["emb_w"].shape[0]
    F = params["layers"][0]["lin1_w"].shape[0]
    assert D % nhead == 0
    P = ((max(3 * D, F, D) + 127) // 128) * 128          # lane-dense packed-vector width

    def stack(fn):
        return jnp.stack([fn(ly) for ly in params["layers"]], axis=0)

    def vec_pack(ly):
        rows = [ly["in_proj_b"], ly["lin1_b"], ly["out_proj_b"], ly["lin2_b"],
                ly["ln1_w"], ly["ln1_b"], ly["ln2_w"], ly["ln2_b"]]
        m = jnp.zeros((8, P), jnp.float32)
        for i, r in enumerate(rows):
            m = m.at[i, :r.shape[0]].set(r.astype(jnp.float32))
        return m

    prep = dict(
        emb_w=params["emb_w"].reshape(1, D).astype(jnp.float32),
        emb_b=params["emb_b"].reshape(1, D).astype(jnp.float32),
        pos=params["pos"][0].astype(jnp.float32),                         # (S, D)
        wqkv=stack(lambda ly: ly["in_proj_w"].T).astype(mxu_dtype),       # (L, D, 3D)
        wo=stack(lambda ly: ly["out_proj_w"].T).astype(mxu_dtype),        # (L, D, D)
        w1=stack(lambda ly: ly["lin1_w"].T).astype(mxu_dtype),            # (L, D, F)
        w2=stack(lambda ly: ly["lin2_w"].T).astype(mxu_dtype),            # (L, F, D)
        vecs=stack(vec_pack),                                             # (L, 8, P) f32
    )
    if "cls_w" in params:
        C = params["cls_w"].shape[0]
        Cpad = ((C + 127) // 128) * 128                                   # lane-dense logits slab
        wc = jnp.zeros((D, Cpad), jnp.float32).at[:, :C].set(params["cls_w"].T)
        bc = jnp.zeros((1, Cpad), jnp.float32).at[:, :C].set(params["cls_b"][None, :])
        prep["wc"], prep["bc"], prep["num_classes"] = wc.astype(mxu_dtype), bc, C
    return prep


# ---------------------------------------------------------------------------
# Forward wrapper
# ---------------------------------------------------------------------------
def betti_encoder_pallas(x, prep, *, nhead, classifier, batch_tile=None, vmem_limit_bytes=None):
    B, S = x.shape
    D = prep["emb_w"].shape[1]
    L = prep["wqkv"].shape[0]
    F = prep["w1"].shape[2]
    P = prep["vecs"].shape[2]
    H = nhead
    assert D % H == 0 and L >= 1
    mxu_bytes = prep["wqkv"].dtype.itemsize
    Cpad = prep["wc"].shape[1] if classifier else 0

    # --- generation-aware tile sizing (128 MiB VMEM on v5e/v6e, 64 MiB + 2 TCs on v7x) ---
    try:
        vmem_cap = int(pltpu.get_tpu_info().vmem_capacity_bytes)
    except Exception:
        vmem_cap = 64 * 1024 * 1024                       # conservative fallback (v7x per-TC)

    def tile_bytes(bt):
        M = bt * S
        act = 4 * M * D                                   # resident layer-sweep scratch
        tmp = 4 * M * 3 * D + (4 + mxu_bytes) * M * F     # qkv + FFN intermediates
        io = 2 * 4 * M + 2 * 4 * (bt * Cpad if classifier else M * D)
        return act + tmp + io

    # bt must divide B; if bt < B, bt*S must be a multiple of 8 ((8,128) block rule / alignment).
    candidates = [bt for bt in range(1, B + 1)
                  if B % bt == 0 and (bt == B or (bt * S) % 8 == 0)]
    if batch_tile is None:
        budget = max(min(vmem_cap // 3, 40 * 1024 * 1024), 4 * 1024 * 1024)
        fitting = [bt for bt in candidates if tile_bytes(bt) <= budget]
        bt = max(fitting) if fitting else min(candidates)
        # v7x-like (small VMEM, 2 TensorCores): keep >=2 batch tiles so both cores get work.
        if vmem_cap <= 80 * 1024 * 1024 and bt == B and B > 1:
            smaller = [c for c in fitting if c < B]
            if smaller:
                bt = max(smaller)
    else:
        bt = batch_tile
        assert bt in candidates, "batch_tile must divide B and keep batch_tile*seq_len % 8 == 0"
    nb = B // bt
    M = bt * S

    if vmem_limit_bytes is None:
        wblk = (3 * D * D + D * D + D * F + F * D) * mxu_bytes + 8 * P * 4
        head_b = (D * Cpad * mxu_bytes + 4 * Cpad) if classifier else 0
        need = tile_bytes(bt) + 2 * wblk + head_b + (4 << 20)
        vmem_limit_bytes = int(min(max(need, 32 << 20), vmem_cap * 3 // 4))

    x2 = x.reshape(B * S, 1).astype(jnp.float32)

    def wspec(shape):                                     # stacked per-layer weight block
        n = len(shape)
        return pl.BlockSpec((1,) + shape, lambda b, l, n=n: (l,) + (0,) * n)

    def const2(shape):                                    # broadcast (layer/batch-invariant) block
        return pl.BlockSpec(shape, lambda b, l: (0, 0))

    in_specs = [
        pl.BlockSpec((M, 1), lambda b, l: (b, 0)),        # x (one scalar per flattened position)
        const2((1, D)), const2((1, D)),                   # emb_w, emb_b
        const2((S, D)),                                   # positional encoding (shared by tiles)
        wspec((D, 3 * D)),                                # fused QKV weight
        wspec((D, D)),                                    # out-proj weight
        wspec((D, F)), wspec((F, D)),                     # FFN weights
        wspec((8, P)),                                    # packed biases / LN vectors
    ]
    args = [x2, prep["emb_w"], prep["emb_b"], prep["pos"],
            prep["wqkv"], prep["wo"], prep["w1"], prep["w2"], prep["vecs"]]

    if classifier:
        in_specs += [const2((D, Cpad)), const2((1, Cpad))]
        args += [prep["wc"], prep["bc"]]
        out_shape = jax.ShapeDtypeStruct((nb, bt, Cpad), jnp.float32)
        out_spec = pl.BlockSpec((1, bt, Cpad), lambda b, l: (b, 0, 0))
    else:
        out_shape = jax.ShapeDtypeStruct((nb, M, D), jnp.float32)
        out_spec = pl.BlockSpec((1, M, D), lambda b, l: (b, 0, 0))

    kernel = functools.partial(_fused_encoder_kernel, H, L, S, bt, classifier)

    out = pl.pallas_call(
        kernel,
        grid=(nb, L),                                     # batch tiles major, layer sweep minor
        in_specs=in_specs,
        out_specs=out_spec,
        out_shape=out_shape,
        scratch_shapes=[pltpu.VMEM((M, D), jnp.float32)],
        compiler_params=pltpu.CompilerParams(
            # The activation scratch carries state across the (minor) layer axis, so that axis
            # must stay "arbitrary"; only the batch-tile axis may be "parallel" (megacore).
            dimension_semantics=("parallel", "arbitrary"),
            vmem_limit_bytes=int(vmem_limit_bytes),
        ),
    )(*args)

    if classifier:
        return out.reshape(B, Cpad)[:, :prep["num_classes"]]
    return out.reshape(B, S, D)


# ---------------------------------------------------------------------------
# Deterministic parameter init (shapes match the PyTorch module __init__)
# ---------------------------------------------------------------------------
def init_params(key, seq_length, d_model, nhead, num_layers, dim_feedforward, num_classes):
    keys = jax.random.split(key, 4 + num_layers)

    def rnd(k, shape, scale=0.05):
        return jax.random.normal(k, shape, dtype=jnp.float32) * scale

    params = {
        "emb_w": rnd(keys[0], (d_model, 1)),
        "emb_b": rnd(jax.random.fold_in(keys[0], 1), (d_model,)),
        "pos": rnd(keys[1], (1, seq_length, d_model)),
        "cls_w": rnd(keys[2], (num_classes, d_model)),
        "cls_b": rnd(jax.random.fold_in(keys[2], 1), (num_classes,)),
        "layers": [],
    }
    for l in range(num_layers):
        ks = jax.random.split(keys[4 + l], 8)
        params["layers"].append(dict(
            in_proj_w=rnd(ks[0], (3 * d_model, d_model)),
            in_proj_b=rnd(ks[1], (3 * d_model,)),
            out_proj_w=rnd(ks[2], (d_model, d_model)),
            out_proj_b=rnd(ks[3], (d_model,)),
            lin1_w=rnd(ks[4], (dim_feedforward, d_model)),
            lin1_b=rnd(ks[5], (dim_feedforward,)),
            lin2_w=rnd(ks[6], (d_model, dim_feedforward)),
            lin2_b=rnd(ks[7], (d_model,)),
            ln1_w=jnp.ones((d_model,), jnp.float32),
            ln1_b=jnp.zeros((d_model,), jnp.float32),
            ln2_w=jnp.ones((d_model,), jnp.float32),
            ln2_b=jnp.zeros((d_model,), jnp.float32),
        ))
    return params


# ---------------------------------------------------------------------------
# Pure-JAX reference (mirrors torch semantics) for a correctness sanity check
# ---------------------------------------------------------------------------
def betti_encoder_ref(x, params, *, nhead, classifier):
    B, S = x.shape
    D = params["emb_w"].shape[0]
    Dh = D // nhead
    h = x[:, :, None] * params["emb_w"].reshape(1, 1, D) + params["emb_b"]
    h = h + params["pos"]

    def ln(t, w, b):
        mu = t.mean(-1, keepdims=True)
        var = ((t - mu) ** 2).mean(-1, keepdims=True)
        return (t - mu) / jnp.sqrt(var + 1e-5) * w + b

    for layer in params["layers"]:
        qkv = jnp.einsum('bsd,ed->bse', h, layer["in_proj_w"]) + layer["in_proj_b"]
        q, k, v = jnp.split(qkv, 3, axis=-1)
        sh = lambda t: t.reshape(B, S, nhead, Dh).transpose(0, 2, 1, 3)
        q, k, v = sh(q), sh(k), sh(v)
        s = jnp.einsum('bhqd,bhkd->bhqk', q, k) / math.sqrt(Dh)
        p = jax.nn.softmax(s, axis=-1)
        o = jnp.einsum('bhqk,bhkd->bhqd', p, v).transpose(0, 2, 1, 3).reshape(B, S, D)
        attn = jnp.einsum('bsd,ed->bse', o, layer["out_proj_w"]) + layer["out_proj_b"]
        h = ln(h + attn, layer["ln1_w"], layer["ln1_b"])
        ff = jnp.maximum(jnp.einsum('bsd,fd->bsf', h, layer["lin1_w"]) + layer["lin1_b"], 0.0)
        ff = jnp.einsum('bsf,df->bsd', ff, layer["lin2_w"]) + layer["lin2_b"]
        h = ln(h + ff, layer["ln2_w"], layer["ln2_b"])

    if classifier:
        h = h.mean(axis=1)
        h = h @ params["cls_w"].T + params["cls_b"]
    return h


if __name__ == "__main__":
    # small shapes consistent with the module
    B, S, D, H, L, F, C = 2, 8, 32, 4, 2, 64, 3
    key = jax.random.PRNGKey(0)
    kx, kp = jax.random.split(key)
    x = jax.random.normal(kx, (B, S), dtype=jnp.float32)
    params = init_params(kp, S, D, H, L, F, C)

    # exact-precision path (tight tolerance) and the production bf16 MXU path (loose tolerance)
    prep_f32 = prepare_params(params, nhead=H, mxu_dtype=jnp.float32)
    prep_bf16 = prepare_params(params, nhead=H, mxu_dtype=jnp.bfloat16)

    for clf in (True, False):
        ref = betti_encoder_ref(x, params, nhead=H, classifier=clf)

        out = jax.block_until_ready(betti_encoder_pallas(x, prep_f32, nhead=H, classifier=clf))
        err = float(jnp.max(jnp.abs(out - ref)))
        if not math.isfinite(err) or err > 2e-2:
            raise AssertionError(f"f32 Pallas/reference mismatch (classifier={clf}): {err}")

        out_bf = jax.block_until_ready(betti_encoder_pallas(x, prep_bf16, nhead=H, classifier=clf))
        err_bf = float(jnp.max(jnp.abs(out_bf - ref)))
        if not math.isfinite(err_bf) or err_bf > 1.5e-1:
            raise AssertionError(f"bf16 Pallas/reference mismatch (classifier={clf}): {err_bf}")

    print("KERNEL_OK")
</pallas_src>

<mosaic_0001>
module attributes {stable_mosaic.version = 11 : i64} {
  func.func @_fused_encoder_kernel(%arg0: i32, %arg1: i32, %arg2: memref<8x1xf32, #tpu.memory_space<vmem>>, %arg3: memref<1x32xf32, #tpu.memory_space<vmem>>, %arg4: memref<1x32xf32, #tpu.memory_space<vmem>>, %arg5: memref<8x32xf32, #tpu.memory_space<vmem>>, %arg6: memref<1x32x96xf32, #tpu.memory_space<vmem>>, %arg7: memref<1x32x32xf32, #tpu.memory_space<vmem>>, %arg8: memref<1x32x64xf32, #tpu.memory_space<vmem>>, %arg9: memref<1x64x32xf32, #tpu.memory_space<vmem>>, %arg10: memref<1x8x128xf32, #tpu.memory_space<vmem>>, %arg11: memref<32x128xf32, #tpu.memory_space<vmem>>, %arg12: memref<1x128xf32, #tpu.memory_space<vmem>>, %arg13: memref<1x1x128xf32, #tpu.memory_space<vmem>>, %arg14: memref<8x32xf32, #tpu.memory_space<vmem>>) attributes {dimension_semantics = [#tpu.dimension_semantics<parallel>, #tpu.dimension_semantics<arbitrary>], iteration_bounds = array<i64: 2, 2>, scalar_prefetch = 0 : i64, scratch_operands = 1 : i64, tpu.core_type = #tpu.core_type<tc>, window_params = [{transform_indices = @transform_0, window_bounds = array<i64: 8, 1>}, {pipeline_mode = #tpu.pipeline_mode<synchronous>, transform_indices = @transform_1, window_bounds = array<i64: 1, 32>}, {pipeline_mode = #tpu.pipeline_mode<synchronous>, transform_indices = @transform_2, window_bounds = array<i64: 1, 32>}, {pipeline_mode = #tpu.pipeline_mode<synchronous>, transform_indices = @transform_3, window_bounds = array<i64: 8, 32>}, {transform_indices = @transform_4, window_bounds = array<i64: 1, 32, 96>}, {transform_indices = @transform_5, window_bounds = array<i64: 1, 32, 32>}, {transform_indices = @transform_6, window_bounds = array<i64: 1, 32, 64>}, {transform_indices = @transform_7, window_bounds = array<i64: 1, 64, 32>}, {transform_indices = @transform_8, window_bounds = array<i64: 1, 8, 128>}, {pipeline_mode = #tpu.pipeline_mode<synchronous>, transform_indices = @transform_9, window_bounds = array<i64: 32, 128>}, {pipeline_mode = #tpu.pipeline_mode<synchronous>, transform_indices = @transform_10, window_bounds = array<i64: 1, 128>}, {transform_indices = @transform_11, window_bounds = array<i64: 1, 1, 128>}]} {
    %c0_i32 = arith.constant 0 : i32
    %0 = arith.cmpi eq, %arg1, %c0_i32 : i32
    %1 = arith.extui %0 : i1 to i32
    %c0_i32_0 = arith.constant 0 : i32
    %2 = arith.cmpi ne, %1, %c0_i32_0 : i32
    scf.if %2 {
      %c0_54 = arith.constant 0 : index
      %c0_55 = arith.constant 0 : index
      %175 = vector.load %arg2[%c0_54, %c0_55] : memref<8x1xf32, #tpu.memory_space<vmem>>, vector<8x1xf32>
      %c0_56 = arith.constant 0 : index
      %c0_57 = arith.constant 0 : index
      %176 = vector.load %arg3[%c0_56, %c0_57] : memref<1x32xf32, #tpu.memory_space<vmem>>, vector<1x32xf32>
      %177 = vector.broadcast %175 : vector<8x1xf32> to vector<8x32xf32>
      %178 = vector.broadcast %176 : vector<1x32xf32> to vector<8x32xf32>
      %179 = arith.mulf %177, %178 : vector<8x32xf32>
      %c0_58 = arith.constant 0 : index
      %c0_59 = arith.constant 0 : index
      %180 = vector.load %arg4[%c0_58, %c0_59] : memref<1x32xf32, #tpu.memory_space<vmem>>, vector<1x32xf32>
      %181 = vector.broadcast %180 : vector<1x32xf32> to vector<8x32xf32>
      %182 = arith.addf %179, %181 : vector<8x32xf32>
      %183 = vector.shape_cast %182 : vector<8x32xf32> to vector<1x8x32xf32>
      %c0_60 = arith.constant 0 : index
      %c0_61 = arith.constant 0 : index
      %184 = vector.load %arg5[%c0_60, %c0_61] : memref<8x32xf32, #tpu.memory_space<vmem>>, vector<8x32xf32>
      %185 = vector.shape_cast %184 : vector<8x32xf32> to vector<1x8x32xf32>
      %186 = arith.addf %183, %185 : vector<1x8x32xf32>
      %187 = vector.shape_cast %186 : vector<1x8x32xf32> to vector<8x32xf32>
      %c0_62 = arith.constant 0 : index
      %c0_63 = arith.constant 0 : index
      %188 = vector.load %arg14[%c0_62, %c0_63] : memref<8x32xf32, #tpu.memory_space<vmem>>, vector<8x32xf32>
      tpu.vector_store %arg14[%c0_62, %c0_63], %187 {strides = array<i32>} : memref<8x32xf32, #tpu.memory_space<vmem>>, vector<8x32xf32>,
    } else {
    }
    %c0 = arith.constant 0 : index
    %c0_1 = arith.constant 0 : index
    %3 = vector.load %arg14[%c0, %c0_1] : memref<8x32xf32, #tpu.memory_space<vmem>>, vector<8x32xf32>
    %c0_2 = arith.constant 0 : index
    %c0_3 = arith.constant 0 : index
    %c0_4 = arith.constant 0 : index
    %4 = vector.load %arg10[%c0_2, %c0_3, %c0_4] : memref<1x8x128xf32, #tpu.memory_space<vmem>>, vector<1x8x128xf32>
    %5 = vector.shape_cast %4 : vector<1x8x128xf32> to vector<8x128xf32>
    %6 = vector.extract_strided_slice %5 {offsets = [0, 0], sizes = [1, 96], strides = [1, 1]} : vector<8x128xf32> to vector<1x96xf32>
    %7 = vector.extract_strided_slice %5 {offsets = [1, 0], sizes = [1, 64], strides = [1, 1]} : vector<8x128xf32> to vector<1x64xf32>
    %8 = vector.extract_strided_slice %5 {offsets = [2, 0], sizes = [1, 32], strides = [1, 1]} : vector<8x128xf32> to vector<1x32xf32>
    %9 = vector.extract_strided_slice %5 {offsets = [3, 0], sizes = [1, 32], strides = [1, 1]} : vector<8x128xf32> to vector<1x32xf32>
    %10 = vector.extract_strided_slice %5 {offsets = [4, 0], sizes = [1, 32], strides = [1, 1]} : vector<8x128xf32> to vector<1x32xf32>
    %11 = vector.extract_strided_slice %5 {offsets = [5, 0], sizes = [1, 32], strides = [1, 1]} : vector<8x128xf32> to vector<1x32xf32>
    %12 = vector.extract_strided_slice %5 {offsets = [6, 0], sizes = [1, 32], strides = [1, 1]} : vector<8x128xf32> to vector<1x32xf32>
    %13 = vector.extract_strided_slice %5 {offsets = [7, 0], sizes = [1, 32], strides = [1, 1]} : vector<8x128xf32> to vector<1x32xf32>
    %c0_5 = arith.constant 0 : index
    %c0_6 = arith.constant 0 : index
    %c0_7 = arith.constant 0 : index
    %14 = vector.load %arg6[%c0_5, %c0_6, %c0_7] : memref<1x32x96xf32, #tpu.memory_space<vmem>>, vector<1x32x96xf32>
    %15 = vector.shape_cast %14 : vector<1x32x96xf32> to vector<32x96xf32>
    %cst = arith.constant dense<0.000000e+00> : vector<8x96xf32>
    %16 = tpu.matmul %3, %15, %cst {dimension_numbers = #tpu.dot_dimension_numbers<[1], [0], [0], [1], [0, 0, 1, 1], [], []>} : vector<8x32xf32>, vector<32x96xf32>, vector<8x96xf32> -> vector<8x96xf32>
    %17 = vector.broadcast %6 : vector<1x96xf32> to vector<8x96xf32>
    %18 = arith.addf %16, %17 : vector<8x96xf32>
    %19 = vector.extract_strided_slice %18 {offsets = [0, 0], sizes = [8, 8], strides = [1, 1]} : vector<8x96xf32> to vector<8x8xf32>
    %20 = vector.shape_cast %19 : vector<8x8xf32> to vector<1x8x8xf32>
    %21 = vector.extract_strided_slice %18 {offsets = [0, 32], sizes = [8, 8], strides = [1, 1]} : vector<8x96xf32> to vector<8x8xf32>
    %22 = vector.shape_cast %21 : vector<8x8xf32> to vector<1x8x8xf32>
    %23 = vector.extract_strided_slice %18 {offsets = [0, 64], sizes = [8, 8], strides = [1, 1]} : vector<8x96xf32> to vector<8x8xf32>
    %24 = vector.shape_cast %23 : vector<8x8xf32> to vector<1x8x8xf32>
    %cst_8 = arith.constant dense<0.000000e+00> : vector<1x8x8xf32>
    %25 = tpu.matmul %20, %22, %cst_8 {dimension_numbers = #tpu.dot_dimension_numbers<[2], [2], [1], [1], [0, 0, 0, 1, 1, 1], [0], [0]>} : vector<1x8x8xf32>, vector<1x8x8xf32>, vector<1x8x8xf32> -> vector<1x8x8xf32>
    %cst_9 = arith.constant 0.353553385 : f32
    %26 = vector.broadcast %cst_9 : f32 to vector<1x8x8xf32>
    %27 = arith.mulf %25, %26 : vector<1x8x8xf32>
    %cst_10 = arith.constant dense<0xFF800000> : vector<1x8xf32>
    %28 = vector.multi_reduction <maximumf>, %27, %cst_10 [2] : vector<1x8x8xf32> to vector<1x8xf32>
    %29 = vector.shape_cast %28 : vector<1x8xf32> to vector<1x8x1xf32>
    %30 = vector.broadcast %29 : vector<1x8x1xf32> to vector<1x8x8xf32>
    %31 = arith.subf %27, %30 : vector<1x8x8xf32>
    %32 = math.exp %31 : vector<1x8x8xf32>
    %cst_11 = arith.constant dense<0.000000e+00> : vector<1x8xf32>
    %33 = vector.multi_reduction <add>, %32, %cst_11 [2] : vector<1x8x8xf32> to vector<1x8xf32>
    %34 = vector.shape_cast %33 : vector<1x8xf32> to vector<1x8x1xf32>
    %35 = tpu.reciprocal %34 {approx = true} : vector<1x8x1xf32> -> vector<1x8x1xf32>
    %36 = vector.broadcast %35 : vector<1x8x1xf32> to vector<1x8x8xf32>
    %37 = arith.mulf %32, %36 : vector<1x8x8xf32>
    %cst_12 = arith.constant dense<0.000000e+00> : vector<1x8x8xf32>
    %38 = tpu.matmul %37, %24, %cst_12 {dimension_numbers = #tpu.dot_dimension_numbers<[2], [1], [1], [2], [0, 0, 0, 1, 1, 2], [0], [0]>} : vector<1x8x8xf32>, vector<1x8x8xf32>, vector<1x8x8xf32> -> vector<1x8x8xf32>
    %39 = vector.shape_cast %38 : vector<1x8x8xf32> to vector<8x8xf32>
    %40 = vector.extract_strided_slice %18 {offsets = [0, 8], sizes = [8, 8], strides = [1, 1]} : vector<8x96xf32> to vector<8x8xf32>
    %41 = vector.shape_cast %40 : vector<8x8xf32> to vector<1x8x8xf32>
    %42 = vector.extract_strided_slice %18 {offsets = [0, 40], sizes = [8, 8], strides = [1, 1]} : vector<8x96xf32> to vector<8x8xf32>
    %43 = vector.shape_cast %42 : vector<8x8xf32> to vector<1x8x8xf32>
    %44 = vector.extract_strided_slice %18 {offsets = [0, 72], sizes = [8, 8], strides = [1, 1]} : vector<8x96xf32> to vector<8x8xf32>
    %45 = vector.shape_cast %44 : vector<8x8xf32> to vector<1x8x8xf32>
    %cst_13 = arith.constant dense<0.000000e+00> : vector<1x8x8xf32>
    %46 = tpu.matmul %41, %43, %cst_13 {dimension_numbers = #tpu.dot_dimension_numbers<[2], [2], [1], [1], [0, 0, 0, 1, 1, 1], [0], [0]>} : vector<1x8x8xf32>, vector<1x8x8xf32>, vector<1x8x8xf32> -> vector<1x8x8xf32>
    %cst_14 = arith.constant 0.353553385 : f32
    %47 = vector.broadcast %cst_14 : f32 to vector<1x8x8xf32>
    %48 = arith.mulf %46, %47 : vector<1x8x8xf32>
    %cst_15 = arith.constant dense<0xFF800000> : vector<1x8xf32>
    %49 = vector.multi_reduction <maximumf>, %48, %cst_15 [2] : vector<1x8x8xf32> to vector<1x8xf32>
    %50 = vector.shape_cast %49 : vector<1x8xf32> to vector<1x8x1xf32>
    %51 = vector.broadcast %50 : vector<1x8x1xf32> to vector<1x8x8xf32>
    %52 = arith.subf %48, %51 : vector<1x8x8xf32>
    %53 = math.exp %52 : vector<1x8x8xf32>
    %cst_16 = arith.constant dense<0.000000e+00> : vector<1x8xf32>
    %54 = vector.multi_reduction <add>, %53, %cst_16 [2] : vector<1x8x8xf32> to vector<1x8xf32>
    %55 = vector.shape_cast %54 : vector<1x8xf32> to vector<1x8x1xf32>
    %56 = tpu.reciprocal %55 {approx = true} : vector<1x8x1xf32> -> vector<1x8x1xf32>
    %57 = vector.broadcast %56 : vector<1x8x1xf32> to vector<1x8x8xf32>
    %58 = arith.mulf %53, %57 : vector<1x8x8xf32>
    %cst_17 = arith.constant dense<0.000000e+00> : vector<1x8x8xf32>
    %59 = tpu.matmul %58, %45, %cst_17 {dimension_numbers = #tpu.dot_dimension_numbers<[2], [1], [1], [2], [0, 0, 0, 1, 1, 2], [0], [0]>} : vector<1x8x8xf32>, vector<1x8x8xf32>, vector<1x8x8xf32> -> vector<1x8x8xf32>
    %60 = vector.shape_cast %59 : vector<1x8x8xf32> to vector<8x8xf32>
    %61 = vector.extract_strided_slice %18 {offsets = [0, 16], sizes = [8, 8], strides = [1, 1]} : vector<8x96xf32> to vector<8x8xf32>
    %62 = vector.shape_cast %61 : vector<8x8xf32> to vector<1x8x8xf32>
    %63 = vector.extract_strided_slice %18 {offsets = [0, 48], sizes = [8, 8], strides = [1, 1]} : vector<8x96xf32> to vector<8x8xf32>
    %64 = vector.shape_cast %63 : vector<8x8xf32> to vector<1x8x8xf32>
    %65 = vector.extract_strided_slice %18 {offsets = [0, 80], sizes = [8, 8], strides = [1, 1]} : vector<8x96xf32> to vector<8x8xf32>
    %66 = vector.shape_cast %65 : vector<8x8xf32> to vector<1x8x8xf32>
    %cst_18 = arith.constant dense<0.000000e+00> : vector<1x8x8xf32>
    %67 = tpu.matmul %62, %64, %cst_18 {dimension_numbers = #tpu.dot_dimension_numbers<[2], [2], [1], [1], [0, 0, 0, 1, 1, 1], [0], [0]>} : vector<1x8x8xf32>, vector<1x8x8xf32>, vector<1x8x8xf32> -> vector<1x8x8xf32>
    %cst_19 = arith.constant 0.353553385 : f32
    %68 = vector.broadcast %cst_19 : f32 to vector<1x8x8xf32>
    %69 = arith.mulf %67, %68 : vector<1x8x8xf32>
    %cst_20 = arith.constant dense<0xFF800000> : vector<1x8xf32>
    %70 = vector.multi_reduction <maximumf>, %69, %cst_20 [2] : vector<1x8x8xf32> to vector<1x8xf32>
    %71 = vector.shape_cast %70 : vector<1x8xf32> to vector<1x8x1xf32>
    %72 = vector.broadcast %71 : vector<1x8x1xf32> to vector<1x8x8xf32>
    %73 = arith.subf %69, %72 : vector<1x8x8xf32>
    %74 = math.exp %73 : vector<1x8x8xf32>
    %cst_21 = arith.constant dense<0.000000e+00> : vector<1x8xf32>
    %75 = vector.multi_reduction <add>, %74, %cst_21 [2] : vector<1x8x8xf32> to vector<1x8xf32>
    %76 = vector.shape_cast %75 : vector<1x8xf32> to vector<1x8x1xf32>
    %77 = tpu.reciprocal %76 {approx = true} : vector<1x8x1xf32> -> vector<1x8x1xf32>
    %78 = vector.broadcast %77 : vector<1x8x1xf32> to vector<1x8x8xf32>
    %79 = arith.mulf %74, %78 : vector<1x8x8xf32>
    %cst_22 = arith.constant dense<0.000000e+00> : vector<1x8x8xf32>
    %80 = tpu.matmul %79, %66, %cst_22 {dimension_numbers = #tpu.dot_dimension_numbers<[2], [1], [1], [2], [0, 0, 0, 1, 1, 2], [0], [0]>} : vector<1x8x8xf32>, vector<1x8x8xf32>, vector<1x8x8xf32> -> vector<1x8x8xf32>
    %81 = vector.shape_cast %80 : vector<1x8x8xf32> to vector<8x8xf32>
    %82 = vector.extract_strided_slice %18 {offsets = [0, 24], sizes = [8, 8], strides = [1, 1]} : vector<8x96xf32> to vector<8x8xf32>
    %83 = vector.shape_cast %82 : vector<8x8xf32> to vector<1x8x8xf32>
    %84 = vector.extract_strided_slice %18 {offsets = [0, 56], sizes = [8, 8], strides = [1, 1]} : vector<8x96xf32> to vector<8x8xf32>
    %85 = vector.shape_cast %84 : vector<8x8xf32> to vector<1x8x8xf32>
    %86 = vector.extract_strided_slice %18 {offsets = [0, 88], sizes = [8, 8], strides = [1, 1]} : vector<8x96xf32> to vector<8x8xf32>
    %87 = vector.shape_cast %86 : vector<8x8xf32> to vector<1x8x8xf32>
    %cst_23 = arith.constant dense<0.000000e+00> : vector<1x8x8xf32>
    %88 = tpu.matmul %83, %85, %cst_23 {dimension_numbers = #tpu.dot_dimension_numbers<[2], [2], [1], [1], [0, 0, 0, 1, 1, 1], [0], [0]>} : vector<1x8x8xf32>, vector<1x8x8xf32>, vector<1x8x8xf32> -> vector<1x8x8xf32>
    %cst_24 = arith.constant 0.353553385 : f32
    %89 = vector.broadcast %cst_24 : f32 to vector<1x8x8xf32>
    %90 = arith.mulf %88, %89 : vector<1x8x8xf32>
    %cst_25 = arith.constant dense<0xFF800000> : vector<1x8xf32>
    %91 = vector.multi_reduction <maximumf>, %90, %cst_25 [2] : vector<1x8x8xf32> to vector<1x8xf32>
    %92 = vector.shape_cast %91 : vector<1x8xf32> to vector<1x8x1xf32>
    %93 = vector.broadcast %92 : vector<1x8x1xf32> to vector<1x8x8xf32>
    %94 = arith.subf %90, %93 : vector<1x8x8xf32>
    %95 = math.exp %94 : vector<1x8x8xf32>
    %cst_26 = arith.constant dense<0.000000e+00> : vector<1x8xf32>
    %96 = vector.multi_reduction <add>, %95, %cst_26 [2] : vector<1x8x8xf32> to vector<1x8xf32>
    %97 = vector.shape_cast %96 : vector<1x8xf32> to vector<1x8x1xf32>
    %98 = tpu.reciprocal %97 {approx = true} : vector<1x8x1xf32> -> vector<1x8x1xf32>
    %99 = vector.broadcast %98 : vector<1x8x1xf32> to vector<1x8x8xf32>
    %100 = arith.mulf %95, %99 : vector<1x8x8xf32>
    %cst_27 = arith.constant dense<0.000000e+00> : vector<1x8x8xf32>
    %101 = tpu.matmul %100, %87, %cst_27 {dimension_numbers = #tpu.dot_dimension_numbers<[2], [1], [1], [2], [0, 0, 0, 1, 1, 2], [0], [0]>} : vector<1x8x8xf32>, vector<1x8x8xf32>, vector<1x8x8xf32> -> vector<1x8x8xf32>
    %102 = vector.shape_cast %101 : vector<1x8x8xf32> to vector<8x8xf32>
    %103 = tpu.concatenate %39, %60, %81, %102 in 1 : vector<8x8xf32>, vector<8x8xf32>, vector<8x8xf32>, vector<8x8xf32> -> vector<8x32xf32>
    %c0_28 = arith.constant 0 : index
    %c0_29 = arith.constant 0 : index
    %c0_30 = arith.constant 0 : index
    %104 = vector.load %arg7[%c0_28, %c0_29, %c0_30] : memref<1x32x32xf32, #tpu.memory_space<vmem>>, vector<1x32x32xf32>
    %105 = vector.shape_cast %104 : vector<1x32x32xf32> to vector<32x32xf32>
    %cst_31 = arith.constant dense<0.000000e+00> : vector<8x32xf32>
    %106 = tpu.matmul %103, %105, %cst_31 {dimension_numbers = #tpu.dot_dimension_numbers<[1], [0], [0], [1], [0, 0, 1, 1], [], []>} : vector<8x32xf32>, vector<32x32xf32>, vector<8x32xf32> -> vector<8x32xf32>
    %107 = vector.broadcast %8 : vector<1x32xf32> to vector<8x32xf32>
    %108 = arith.addf %106, %107 : vector<8x32xf32>
    %109 = arith.addf %3, %108 : vector<8x32xf32>
    %cst_32 = arith.constant dense<0.000000e+00> : vector<8xf32>
    %110 = vector.multi_reduction <add>, %109, %cst_32 [1] : vector<8x32xf32> to vector<8xf32>
    %111 = vector.shape_cast %110 : vector<8xf32> to vector<8x1xf32>
    %cst_33 = arith.constant 3.200000e+01 : f32
    %112 = vector.broadcast %cst_33 : f32 to vector<8x1xf32>
    %113 = arith.divf %111, %112 : vector<8x1xf32>
    %114 = vector.broadcast %113 : vector<8x1xf32> to vector<8x32xf32>
    %115 = arith.subf %109, %114 : vector<8x32xf32>
    %116 = vector.broadcast %113 : vector<8x1xf32> to vector<8x32xf32>
    %117 = arith.subf %109, %116 : vector<8x32xf32>
    %118 = arith.mulf %115, %117 : vector<8x32xf32>
    %cst_34 = arith.constant dense<0.000000e+00> : vector<8xf32>
    %119 = vector.multi_reduction <add>, %118, %cst_34 [1] : vector<8x32xf32> to vector<8xf32>
    %120 = vector.shape_cast %119 : vector<8xf32> to vector<8x1xf32>
    %cst_35 = arith.constant 3.200000e+01 : f32
    %121 = vector.broadcast %cst_35 : f32 to vector<8x1xf32>
    %122 = arith.divf %120, %121 : vector<8x1xf32>
    %123 = vector.broadcast %113 : vector<8x1xf32> to vector<8x32xf32>
    %124 = arith.subf %109, %123 : vector<8x32xf32>
    %cst_36 = arith.constant 9.99999974E-6 : f32
    %125 = vector.broadcast %cst_36 : f32 to vector<8x1xf32>
    %126 = arith.addf %122, %125 : vector<8x1xf32>
    %127 = math.rsqrt %126 : vector<8x1xf32>
    %128 = vector.broadcast %127 : vector<8x1xf32> to vector<8x32xf32>
    %129 = arith.mulf %124, %128 : vector<8x32xf32>
    %130 = vector.broadcast %10 : vector<1x32xf32> to vector<8x32xf32>
    %131 = arith.mulf %129, %130 : vector<8x32xf32>
    %132 = vector.broadcast %11 : vector<1x32xf32> to vector<8x32xf32>
    %133 = arith.addf %131, %132 : vector<8x32xf32>
    %c0_37 = arith.constant 0 : index
    %c0_38 = arith.constant 0 : index
    %c0_39 = arith.constant 0 : index
    %134 = vector.load %arg8[%c0_37, %c0_38, %c0_39] : memref<1x32x64xf32, #tpu.memory_space<vmem>>, vector<1x32x64xf32>
    %135 = vector.shape_cast %134 : vector<1x32x64xf32> to vector<32x64xf32>
    %cst_40 = arith.constant dense<0.000000e+00> : vector<8x64xf32>
    %136 = tpu.matmul %133, %135, %cst_40 {dimension_numbers = #tpu.dot_dimension_numbers<[1], [0], [0], [1], [0, 0, 1, 1], [], []>} : vector<8x32xf32>, vector<32x64xf32>, vector<8x64xf32> -> vector<8x64xf32>
    %137 = vector.broadcast %7 : vector<1x64xf32> to vector<8x64xf32>
    %138 = arith.addf %136, %137 : vector<8x64xf32>
    %cst_41 = arith.constant 0.000000e+00 : f32
    %139 = vector.broadcast %cst_41 : f32 to vector<8x64xf32>
    %140 = arith.maximumf %138, %139 : vector<8x64xf32>
    %c0_42 = arith.constant 0 : index
    %c0_43 = arith.constant 0 : index
    %c0_44 = arith.constant 0 : index
    %141 = vector.load %arg9[%c0_42, %c0_43, %c0_44] : memref<1x64x32xf32, #tpu.memory_space<vmem>>, vector<1x64x32xf32>
    %142 = vector.shape_cast %141 : vector<1x64x32xf32> to vector<64x32xf32>
    %cst_45 = arith.constant dense<0.000000e+00> : vector<8x32xf32>
    %143 = tpu.matmul %140, %142, %cst_45 {dimension_numbers = #tpu.dot_dimension_numbers<[1], [0], [0], [1], [0, 0, 1, 1], [], []>} : vector<8x64xf32>, vector<64x32xf32>, vector<8x32xf32> -> vector<8x32xf32>
    %144 = vector.broadcast %9 : vector<1x32xf32> to vector<8x32xf32>
    %145 = arith.addf %143, %144 : vector<8x32xf32>
    %146 = arith.addf %133, %145 : vector<8x32xf32>
    %cst_46 = arith.constant dense<0.000000e+00> : vector<8xf32>
    %147 = vector.multi_reduction <add>, %146, %cst_46 [1] : vector<8x32xf32> to vector<8xf32>
    %148 = vector.shape_cast %147 : vector<8xf32> to vector<8x1xf32>
    %cst_47 = arith.constant 3.200000e+01 : f32
    %149 = vector.broadcast %cst_47 : f32 to vector<8x1xf32>
    %150 = arith.divf %148, %149 : vector<8x1xf32>
    %151 = vector.broadcast %150 : vector<8x1xf32> to vector<8x32xf32>
    %152 = arith.subf %146, %151 : vector<8x32xf32>
    %153 = vector.broadcast %150 : vector<8x1xf32> to vector<8x32xf32>
    %154 = arith.subf %146, %153 : vector<8x32xf32>
    %155 = arith.mulf %152, %154 : vector<8x32xf32>
    %cst_48 = arith.constant dense<0.000000e+00> : vector<8xf32>
    %156 = vector.multi_reduction <add>, %155, %cst_48 [1] : vector<8x32xf32> to vector<8xf32>
    %157 = vector.shape_cast %156 : vector<8xf32> to vector<8x1xf32>
    %cst_49 = arith.constant 3.200000e+01 : f32
    %158 = vector.broadcast %cst_49 : f32 to vector<8x1xf32>
    %159 = arith.divf %157, %158 : vector<8x1xf32>
    %160 = vector.broadcast %150 : vector<8x1xf32> to vector<8x32xf32>
    %161 = arith.subf %146, %160 : vector<8x32xf32>
    %cst_50 = arith.constant 9.99999974E-6 : f32
    %162 = vector.broadcast %cst_50 : f32 to vector<8x1xf32>
    %163 = arith.addf %159, %162 : vector<8x1xf32>
    %164 = math.rsqrt %163 : vector<8x1xf32>
    %165 = vector.broadcast %164 : vector<8x1xf32> to vector<8x32xf32>
    %166 = arith.mulf %161, %165 : vector<8x32xf32>
    %167 = vector.broadcast %12 : vector<1x32xf32> to vector<8x32xf32>
    %168 = arith.mulf %166, %167 : vector<8x32xf32>
    %169 = vector.broadcast %13 : vector<1x32xf32> to vector<8x32xf32>
    %170 = arith.addf %168, %169 : vector<8x32xf32>
    %c0_51 = arith.constant 0 : index
    %c0_52 = arith.constant 0 : index
    %171 = vector.load %arg14[%c0_51, %c0_52] : memref<8x32xf32, #tpu.memory_space<vmem>>, vector<8x32xf32>
    tpu.vector_store %arg14[%c0_51, %c0_52], %170 {strides = array<i32>} : memref<8x32xf32, #tpu.memory_space<vmem>>, vector<8x32xf32>,
    %c1_i32 = arith.constant 1 : i32
    %172 = arith.cmpi eq, %arg1, %c1_i32 : i32
    %173 = arith.extui %172 : i1 to i32
    %c0_i32_53 = arith.constant 0 : i32
    %174 = arith.cmpi ne, %173, %c0_i32_53 : i32
    scf.if %174 {
      %175 = vector.shape_cast %170 : vector<8x32xf32> to vector<1x8x32xf32>
      %cst_54 = arith.constant dense<0.000000e+00> : vector<1x32xf32>
      %176 = vector.multi_reduction <add>, %175, %cst_54 [1] : vector<1x8x32xf32> to vector<1x32xf32>
      %cst_55 = arith.constant 8.000000e+00 : f32
      %177 = vector.broadcast %cst_55 : f32 to vector<1x32xf32>
      %178 = arith.divf %176, %177 : vector<1x32xf32>
      %c0_56 = arith.constant 0 : index
      %c0_57 = arith.constant 0 : index
      %179 = vector.load %arg11[%c0_56, %c0_57] : memref<32x128xf32, #tpu.memory_space<vmem>>, vector<32x128xf32>
      %cst_58 = arith.constant dense<0.000000e+00> : vector<1x128xf32>
      %180 = tpu.matmul %178, %179, %cst_58 {dimension_numbers = #tpu.dot_dimension_numbers<[1], [0], [0], [1], [0, 0, 1, 1], [], []>} : vector<1x32xf32>, vector<32x128xf32>, vector<1x128xf32> -> vector<1x128xf32>
      %c0_59 = arith.constant 0 : index
      %c0_60 = arith.constant 0 : index
      %181 = vector.load %arg12[%c0_59, %c0_60] : memref<1x128xf32, #tpu.memory_space<vmem>>, vector<1x128xf32>
      %182 = arith.addf %180, %181 : vector<1x128xf32>
      %c0_61 = arith.constant 0 : index
      %c0_62 = arith.constant 0 : index
      %c0_63 = arith.constant 0 : index
      %183 = vector.load %arg13[%c0_61, %c0_62, %c0_63] : memref<1x1x128xf32, #tpu.memory_space<vmem>>, vector<1x1x128xf32>
      %184 = vector.shape_cast %183 : vector<1x1x128xf32> to vector<1x128xf32>
      %185 = vector.shape_cast %182 : vector<1x128xf32> to vector<1x1x128xf32>
      tpu.vector_store %arg13[%c0_61, %c0_62, %c0_63], %185 {strides = array<i32>} : memref<1x1x128xf32, #tpu.memory_space<vmem>>, vector<1x1x128xf32>,
    } else {
    }
    return
  }
  func.func @transform_0(%arg0: i32, %arg1: i32) -> (i32, i32) {
    %c0_i32 = arith.constant 0 : i32
    %c0_i32_0 = arith.constant 0 : i32
    return %arg0, %c0_i32 : i32, i32
  }
  func.func @transform_1(%arg0: i32, %arg1: i32) -> (i32, i32) {
    %c0_i32 = arith.constant 0 : i32
    %c0_i32_0 = arith.constant 0 : i32
    %c0_i32_1 = arith.constant 0 : i32
    return %c0_i32, %c0_i32_0 : i32, i32
  }
  func.func @transform_2(%arg0: i32, %arg1: i32) -> (i32, i32) {
    %c0_i32 = arith.constant 0 : i32
    %c0_i32_0 = arith.constant 0 : i32
    %c0_i32_1 = arith.constant 0 : i32
    return %c0_i32, %c0_i32_0 : i32, i32
  }
  func.func @transform_3(%arg0: i32, %arg1: i32) -> (i32, i32) {
    %c0_i32 = arith.constant 0 : i32
    %c0_i32_0 = arith.constant 0 : i32
    %c0_i32_1 = arith.constant 0 : i32
    return %c0_i32, %c0_i32_0 : i32, i32
  }
  func.func @transform_4(%arg0: i32, %arg1: i32) -> (i32, i32, i32) {
    %c0_i32 = arith.constant 0 : i32
    %c0_i32_0 = arith.constant 0 : i32
    %c0_i32_1 = arith.constant 0 : i32
    return %arg1, %c0_i32, %c0_i32_0 : i32, i32, i32
  }
  func.func @transform_5(%arg0: i32, %arg1: i32) -> (i32, i32, i32) {
    %c0_i32 = arith.constant 0 : i32
    %c0_i32_0 = arith.constant 0 : i32
    %c0_i32_1 = arith.constant 0 : i32
    return %arg1, %c0_i32, %c0_i32_0 : i32, i32, i32
  }
  func.func @transform_6(%arg0: i32, %arg1: i32) -> (i32, i32, i32) {
    %c0_i32 = arith.constant 0 : i32
    %c0_i32_0 = arith.constant 0 : i32
    %c0_i32_1 = arith.constant 0 : i32
    return %arg1, %c0_i32, %c0_i32_0 : i32, i32, i32
  }
  func.func @transform_7(%arg0: i32, %arg1: i32) -> (i32, i32, i32) {
    %c0_i32 = arith.constant 0 : i32
    %c0_i32_0 = arith.constant 0 : i32
    %c0_i32_1 = arith.constant 0 : i32
    return %arg1, %c0_i32, %c0_i32_0 : i32, i32, i32
  }
  func.func @transform_8(%arg0: i32, %arg1: i32) -> (i32, i32, i32) {
    %c0_i32 = arith.constant 0 : i32
    %c0_i32_0 = arith.constant 0 : i32
    %c0_i32_1 = arith.constant 0 : i32
    return %arg1, %c0_i32, %c0_i32_0 : i32, i32, i32
  }
  func.func @transform_9(%arg0: i32, %arg1: i32) -> (i32, i32) {
    %c0_i32 = arith.constant 0 : i32
    %c0_i32_0 = arith.constant 0 : i32
    %c0_i32_1 = arith.constant 0 : i32
    return %c0_i32, %c0_i32_0 : i32, i32
  }
  func.func @transform_10(%arg0: i32, %arg1: i32) -> (i32, i32) {
    %c0_i32 = arith.constant 0 : i32
    %c0_i32_0 = arith.constant 0 : i32
    %c0_i32_1 = arith.constant 0 : i32
    return %c0_i32, %c0_i32_0 : i32, i32
  }
  func.func @transform_11(%arg0: i32, %arg1: i32) -> (i32, i32, i32) {
    %c0_i32 = arith.constant 0 : i32
    %c0_i32_0 = arith.constant 0 : i32
    %c0_i32_1 = arith.constant 0 : i32
    return %arg0, %c0_i32, %c0_i32_0 : i32, i32, i32
  }
}

</mosaic_0001>

<llo_original>
// kernel: tpu_custom_call.1
$region0: #{tpu_custom_call.1}
  #allocation0 [shape = 'u32[]', space=smem, size = 0x4, offset = 0x4, fixed_abs, tag = 'smem constant byte address 0x4 - core index']
  #allocation1 [shape = 'u32[72,128]{1,0:T(1,128)}', space=vmem, size = 0x9000, scoped, tag = 'internal scratch']
  #allocation2 [shape = 'f32[8,32]{1,0:T(8,128)}', space=vmem, size = 0x1000, scoped, tag = 'scratch operand']
  %s0 = inlined_call_operand.vmem [shape: f32[16,1], index: 0, kind: input, shape index: {}]
  %s1 = inlined_call_operand.vmem [shape: f32[1,32], index: 1, kind: input, shape index: {}]
  %s2 = inlined_call_operand.hbm [shape: f32[1,32], index: 2, kind: input, shape index: {}]
  %s3 = inlined_call_operand.hbm [shape: f32[8,32], index: 3, kind: input, shape index: {}]
  %s4 = inlined_call_operand.vmem [shape: f32[2,32,96], index: 4, kind: input, shape index: {}]
  %s5 = inlined_call_operand.vmem [shape: f32[2,32,32], index: 5, kind: input, shape index: {}]
  %s6 = inlined_call_operand.vmem [shape: f32[2,32,64], index: 6, kind: input, shape index: {}]
  %s7 = inlined_call_operand.vmem [shape: f32[2,64,32], index: 7, kind: input, shape index: {}]
  %s8 = inlined_call_operand.vmem [shape: f32[2,8,128], index: 8, kind: input, shape index: {}]
  %s9 = inlined_call_operand.hbm [shape: f32[32,128], index: 9, kind: input, shape index: {}]
  %s10 = inlined_call_operand.vmem [shape: f32[1,128], index: 10, kind: input, shape index: {}]
  %s11 = inlined_call_operand.hbm [shape: f32[2,1,128], index: 11, kind: output, shape index: {}]
  %s12 = sld [smem:[#allocation0]]
  $region97: #{tpu_custom_call.1} parent=0
    _
  %s14 = ssub.s32 1, %s12
  %s15 = scalar_select 0, %s14, %s12
  $region1: #{tpu_custom_call.1} parent=0
    #allocation3 [shape = 'u8[512]{0}', space=vmem, size = 0x400, scoped, tag = 'input window, operand 2, single buffered']
    #allocation4 [shape = 's32[2]{0}', space=sflag, size = 0x8, scoped, tag = 'scoped memory for tpu_custom_call.1']
    #allocation5 [shape = 's32[2]{0}', space=sflag, size = 0x8, scoped, tag = 'scoped memory for tpu_custom_call.1']
    #allocation6 [shape = 'u8[4096]{0}', space=vmem, size = 0x1000, scoped, tag = 'input window, operand 3, single buffered']
    #allocation7 [shape = 's32[1]{0}', space=sflag, size = 0x4, scoped, tag = 'scoped memory for tpu_custom_call.1']
    #allocation8 [shape = 'u8[16384]{0}', space=vmem, size = 0x4000, scoped, tag = 'input window, operand 9, single buffered']
    #allocation9 [shape = 'u8[1024]{0}', space=vmem, size = 0x400, scoped, tag = 'output window, operand 0']
    %16 = vsyncpa [#allocation4], 0
    %17 = vsyncpa [#allocation7], 0
    %18 = vsyncpa [#allocation5], 0
    %s19 = scalar_lea.sflag [#allocation5], 1
    %20 = vsyncpa %s19, 0
    loop: start=0, step=1, limit=6
    $region2: #{tpu_custom_call.1} parent=1 // loop_pre_header
      _
    $region3: #{tpu_custom_call.1} parent=1 // loop_header
      %s22 = sphi 0, %s26
      %p23 = scmp.ge.s32.totalorder %s22, 6
      %s29 = sphi 0, %s41
      %s30 = sphi 0, %s37
      %s31 = sphi 0, %s29
      %s32 = sphi 0, %s30
      %s33 = sphi 0, %s31
      %s34 = sphi 0, %s32
      %s44 = sphi 0, %s46
      %s47 = sphi 0, %s44
      %s48 = sphi 0, %s47
      %s64 = sphi 0, %s48
      %s68 = sphi 0, %s68
      %s70 = sphi 0, %s68
      %s71 = sphi 0, %s70
      %s85 = sphi 0, %s71
      %s89 = sphi 0, %s89
      %s91 = sphi 0, %s89
      %s92 = sphi 0, %s91
      %s106 = sphi 0, %s92
      %s110 = sphi 0, %s110
      %s112 = sphi 0, %s110
      %s113 = sphi 0, %s112
      %s127 = sphi 0, %s113
      %s133 = sphi 0, %s135
      %s136 = sphi 0, %s133
      %s137 = sphi 0, %s136
      %s153 = sphi 0, %s137
      %s159 = sphi 0, %s161
      %s162 = sphi 0, %s159
      %s163 = sphi 0, %s162
      %s179 = sphi 0, %s163
      %s185 = sphi 0, %s187
      %s188 = sphi 0, %s185
      %s189 = sphi 0, %s188
      %s205 = sphi 0, %s189
      %s211 = sphi 0, %s213
      %s214 = sphi 0, %s211
      %s215 = sphi 0, %s214
      %s231 = sphi 0, %s215
      %s237 = sphi 0, %s239
      %s240 = sphi 0, %s237
      %s241 = sphi 0, %s240
      %s257 = sphi 0, %s241
      %s261 = sphi 0, %s261
      %s263 = sphi 0, %s261
      %s264 = sphi 0, %s263
      %s278 = sphi 0, %s264
      %s282 = sphi 0, %s282
      %s284 = sphi 0, %s282
      %s285 = sphi 0, %s284
      %s299 = sphi 0, %s285
      %s305 = sphi 0, %s307
      %s308 = sphi 0, %s305
      %s309 = sphi 0, %s308
      %s325 = sphi 0, %s309
    $region4: #{tpu_custom_call.1} parent=1 // loop_header_branch
      %25 = sbr.rel (%p23) target = $region8
    $region5: #{tpu_custom_call.1} parent=1 // loop_body
      %s27 = ssub.s32 %s22, 1
      %s28 = ssub.s32 %s22, 2
      %s35 = sadd.s32 1, %s30
      %p36 = scmp.ge.s32.totalorder %s35, 2
      %s37 = scalar_select %p36, 0, %s35
      %s38 = sadd.s32 1, %s29
      %s39 = scalar_select %p36, %s38, %s29
      %p40 = scmp.ge.s32.totalorder %s39, 2
      %s41 = scalar_select %p40, 0, %s39
      %s42 = ssub.s32 %s29, %s41
      %p43 = scmp.eq.s32.totalorder %s42, 0
      %s45 = sadd.s32 %s44, 1
      %s46 = scalar_select %p43, %s44, %s45
      %p49 = pneg %p43
      %p50 = scmp.eq.s32.totalorder %s22, 3
      %p51 = por %p49, %p50
      %p52 = scmp.ne.s32.totalorder %s44, %s47
      %p53 = scmp.eq.s32.totalorder %s22, 0
      %p54 = por %p52, %p53
      %p55 = scmp.ne.s32.totalorder %s44, %s47
      %p56 = scmp.eq.s32.totalorder %s27, 3
      %p57 = por %p55, %p56
      %p58 = scmp.ne.s32.totalorder %s47, %s48
      %p59 = scmp.eq.s32.totalorder %s27, 0
      %p60 = por %p58, %p59
      %p61 = scmp.ne.s32.totalorder %s47, %s48
      %p62 = scmp.eq.s32.totalorder %s28, 3
      %p63 = por %p61, %p62
      %p65 = scmp.ne.s32.totalorder %s48, %s64
      %p66 = scmp.eq.s32.totalorder %s28, 0
      %p67 = por %p65, %p66
      %s69 = sadd.s32 %s68, 1
      %p72 = scmp.eq.s32.totalorder %s22, 3
      %p73 = scmp.ne.s32.totalorder %s68, %s70
      %p74 = scmp.eq.s32.totalorder %s22, 0
      %p75 = por %p73, %p74
      %p76 = scmp.ne.s32.totalorder %s68, %s70
      %p77 = scmp.eq.s32.totalorder %s27, 3
      %p78 = por %p76, %p77
      %p79 = scmp.ne.s32.totalorder %s70, %s71
      %p80 = scmp.eq.s32.totalorder %s27, 0
      %p81 = por %p79, %p80
      %p82 = scmp.ne.s32.totalorder %s70, %s71
      %p83 = scmp.eq.s32.totalorder %s28, 3
      %p84 = por %p82, %p83
      %p86 = scmp.ne.s32.totalorder %s71, %s85
      %p87 = scmp.eq.s32.totalorder %s28, 0
      %p88 = por %p86, %p87
      %s90 = sadd.s32 %s89, 1
      %p93 = scmp.eq.s32.totalorder %s22, 3
      %p94 = scmp.ne.s32.totalorder %s89, %s91
      %p95 = scmp.eq.s32.totalorder %s22, 0
      %p96 = por %p94, %p95
      %p97 = scmp.ne.s32.totalorder %s89, %s91
      %p98 = scmp.eq.s32.totalorder %s27, 3
      %p99 = por %p97, %p98
      %p100 = scmp.ne.s32.totalorder %s91, %s92
      %p101 = scmp.eq.s32.totalorder %s27, 0
      %p102 = por %p100, %p101
      %p103 = scmp.ne.s32.totalorder %s91, %s92
      %p104 = scmp.eq.s32.totalorder %s28, 3
      %p105 = por %p103, %p104
      %p107 = scmp.ne.s32.totalorder %s92, %s106
      %p108 = scmp.eq.s32.totalorder %s28, 0
      %p109 = por %p107, %p108
      %s111 = sadd.s32 %s110, 1
      %p114 = scmp.eq.s32.totalorder %s22, 3
      %p115 = scmp.ne.s32.totalorder %s110, %s112
      %p116 = scmp.eq.s32.totalorder %s22, 0
      %p117 = por %p115, %p116
      %p118 = scmp.ne.s32.totalorder %s110, %s112
      %p119 = scmp.eq.s32.totalorder %s27, 3
      %p120 = por %p118, %p119
      %p121 = scmp.ne.s32.totalorder %s112, %s113
      %p122 = scmp.eq.s32.totalorder %s27, 0
      %p123 = por %p121, %p122
      %p124 = scmp.ne.s32.totalorder %s112, %s113
      %p125 = scmp.eq.s32.totalorder %s28, 3
      %p126 = por %p124, %p125
      %p128 = scmp.ne.s32.totalorder %s113, %s127
      %p129 = scmp.eq.s32.totalorder %s28, 0
      %p130 = por %p128, %p129
      %s131 = ssub.s32 %s30, %s37
      %p132 = scmp.eq.s32.totalorder %s131, 0
      %s134 = sadd.s32 %s133, 1
      %s135 = scalar_select %p132, %s133, %s134
      %p138 = pneg %p132
      %p139 = scmp.eq.s32.totalorder %s22, 3
      %p140 = por %p138, %p139
      %p141 = scmp.ne.s32.totalorder %s133, %s136
      %p142 = scmp.eq.s32.totalorder %s22, 0
      %p143 = por %p141, %p142
      %p144 = scmp.ne.s32.totalorder %s133, %s136
      %p145 = scmp.eq.s32.totalorder %s27, 3
      %p146 = por %p144, %p145
      %p147 = scmp.ne.s32.totalorder %s136, %s137
      %p148 = scmp.eq.s32.totalorder %s27, 0
      %p149 = por %p147, %p148
      %p150 = scmp.ne.s32.totalorder %s136, %s137
      %p151 = scmp.eq.s32.totalorder %s28, 3
      %p152 = por %p150, %p151
      %p154 = scmp.ne.s32.totalorder %s137, %s153
      %p155 = scmp.eq.s32.totalorder %s28, 0
      %p156 = por %p154, %p155
      %s157 = ssub.s32 %s30, %s37
      %p158 = scmp.eq.s32.totalorder %s157, 0
      %s160 = sadd.s32 %s159, 1
      %s161 = scalar_select %p158, %s159, %s160
      %p164 = pneg %p158
      %p165 = scmp.eq.s32.totalorder %s22, 3
      %p166 = por %p164, %p165
      %p167 = scmp.ne.s32.totalorder %s159, %s162
      %p168 = scmp.eq.s32.totalorder %s22, 0
      %p169 = por %p167, %p168
      %p170 = scmp.ne.s32.totalorder %s159, %s162
      %p171 = scmp.eq.s32.totalorder %s27, 3
      %p172 = por %p170, %p171
      %p173 = scmp.ne.s32.totalorder %s162, %s163
      %p174 = scmp.eq.s32.totalorder %s27, 0
      %p175 = por %p173, %p174
      %p176 = scmp.ne.s32.totalorder %s162, %s163
      %p177 = scmp.eq.s32.totalorder %s28, 3
      %p178 = por %p176, %p177
      %p180 = scmp.ne.s32.totalorder %s163, %s179
      %p181 = scmp.eq.s32.totalorder %s28, 0
      %p182 = por %p180, %p181
      %s183 = ssub.s32 %s30, %s37
      %p184 = scmp.eq.s32.totalorder %s183, 0
      %s186 = sadd.s32 %s185, 1
      %s187 = scalar_select %p184, %s185, %s186
      %p190 = pneg %p184
      %p191 = scmp.eq.s32.totalorder %s22, 3
      %p192 = por %p190, %p191
      %p193 = scmp.ne.s32.totalorder %s185, %s188
      %p194 = scmp.eq.s32.totalorder %s22, 0
      %p195 = por %p193, %p194
      %p196 = scmp.ne.s32.totalorder %s185, %s188
      %p197 = scmp.eq.s32.totalorder %s27, 3
      %p198 = por %p196, %p197
      %p199 = scmp.ne.s32.totalorder %s188, %s189
      %p200 = scmp.eq.s32.totalorder %s27, 0
      %p201 = por %p199, %p200
      %p202 = scmp.ne.s32.totalorder %s188, %s189
      %p203 = scmp.eq.s32.totalorder %s28, 3
      %p204 = por %p202, %p203
      %p206 = scmp.ne.s32.totalorder %s189, %s205
      %p207 = scmp.eq.s32.totalorder %s28, 0
      %p208 = por %p206, %p207
      %s209 = ssub.s32 %s30, %s37
      %p210 = scmp.eq.s32.totalorder %s209, 0
      %s212 = sadd.s32 %s211, 1
      %s213 = scalar_select %p210, %s211, %s212
      %p216 = pneg %p210
      %p217 = scmp.eq.s32.totalorder %s22, 3
      %p218 = por %p216, %p217
      %p219 = scmp.ne.s32.totalorder %s211, %s214
      %p220 = scmp.eq.s32.totalorder %s22, 0
      %p221 = por %p219, %p220
      %p222 = scmp.ne.s32.totalorder %s211, %s214
      %p223 = scmp.eq.s32.totalorder %s27, 3
      %p224 = por %p222, %p223
      %p225 = scmp.ne.s32.totalorder %s214, %s215
      %p226 = scmp.eq.s32.totalorder %s27, 0
      %p227 = por %p225, %p226
      %p228 = scmp.ne.s32.totalorder %s214, %s215
      %p229 = scmp.eq.s32.totalorder %s28, 3
      %p230 = por %p228, %p229
      %p232 = scmp.ne.s32.totalorder %s215, %s231
      %p233 = scmp.eq.s32.totalorder %s28, 0
      %p234 = por %p232, %p233
      %s235 = ssub.s32 %s30, %s37
      %p236 = scmp.eq.s32.totalorder %s235, 0
      %s238 = sadd.s32 %s237, 1
      %s239 = scalar_select %p236, %s237, %s238
      %p242 = pneg %p236
      %p243 = scmp.eq.s32.totalorder %s22, 3
      %p244 = por %p242, %p243
      %p245 = scmp.ne.s32.totalorder %s237, %s240
      %p246 = scmp.eq.s32.totalorder %s22, 0
      %p247 = por %p245, %p246
      %p248 = scmp.ne.s32.totalorder %s237, %s240
      %p249 = scmp.eq.s32.totalorder %s27, 3
      %p250 = por %p248, %p249
      %p251 = scmp.ne.s32.totalorder %s240, %s241
      %p252 = scmp.eq.s32.totalorder %s27, 0
      %p253 = por %p251, %p252
      %p254 = scmp.ne.s32.totalorder %s240, %s241
      %p255 = scmp.eq.s32.totalorder %s28, 3
      %p256 = por %p254, %p255
      %p258 = scmp.ne.s32.totalorder %s241, %s257
      %p259 = scmp.eq.s32.totalorder %s28, 0
      %p260 = por %p258, %p259
      %s262 = sadd.s32 %s261, 1
      %p265 = scmp.eq.s32.totalorder %s22, 3
      %p266 = scmp.ne.s32.totalorder %s261, %s263
      %p267 = scmp.eq.s32.totalorder %s22, 0
      %p268 = por %p266, %p267
      %p269 = scmp.ne.s32.totalorder %s261, %s263
      %p270 = scmp.eq.s32.totalorder %s27, 3
      %p271 = por %p269, %p270
      %p272 = scmp.ne.s32.totalorder %s263, %s264
      %p273 = scmp.eq.s32.totalorder %s27, 0
      %p274 = por %p272, %p273
      %p275 = scmp.ne.s32.totalorder %s263, %s264
      %p276 = scmp.eq.s32.totalorder %s28, 3
      %p277 = por %p275, %p276
      %p279 = scmp.ne.s32.totalorder %s264, %s278
      %p280 = scmp.eq.s32.totalorder %s28, 0
      %p281 = por %p279, %p280
      %s283 = sadd.s32 %s282, 1
      %p286 = scmp.eq.s32.totalorder %s22, 3
      %p287 = scmp.ne.s32.totalorder %s282, %s284
      %p288 = scmp.eq.s32.totalorder %s22, 0
      %p289 = por %p287, %p288
      %p290 = scmp.ne.s32.totalorder %s282, %s284
      %p291 = scmp.eq.s32.totalorder %s27, 3
      %p292 = por %p290, %p291
      %p293 = scmp.ne.s32.totalorder %s284, %s285
      %p294 = scmp.eq.s32.totalorder %s27, 0
      %p295 = por %p293, %p294
      %p296 = scmp.ne.s32.totalorder %s284, %s285
      %p297 = scmp.eq.s32.totalorder %s28, 3
      %p298 = por %p296, %p297
      %p300 = scmp.ne.s32.totalorder %s285, %s299
      %p301 = scmp.eq.s32.totalorder %s28, 0
      %p302 = por %p300, %p301
      %s303 = ssub.s32 %s29, %s41
      %p304 = scmp.eq.s32.totalorder %s303, 0
      %s306 = sadd.s32 %s305, 1
      %s307 = scalar_select %p304, %s305, %s306
      %p310 = pneg %p304
      %p311 = scmp.eq.s32.totalorder %s22, 3
      %p312 = por %p310, %p311
      %p313 = scmp.ne.s32.totalorder %s305, %s308
      %p314 = scmp.eq.s32.totalorder %s22, 0
      %p315 = por %p313, %p314
      %p316 = scmp.ne.s32.totalorder %s305, %s308
      %p317 = scmp.eq.s32.totalorder %s27, 3
      %p318 = por %p316, %p317
      %p319 = scmp.ne.s32.totalorder %s308, %s309
      %p320 = scmp.eq.s32.totalorder %s27, 0
      %p321 = por %p319, %p320
      %p322 = scmp.ne.s32.totalorder %s308, %s309
      %p323 = scmp.eq.s32.totalorder %s28, 3
      %p324 = por %p322, %p323
      %p326 = scmp.ne.s32.totalorder %s309, %s325
      %p327 = scmp.eq.s32.totalorder %s28, 0
      %p328 = por %p326, %p327
      %p329 = scmp.le.s32.totalorder 1, %s22
      %p330 = scmp.lt.s32.totalorder %s22, 5
      %p331 = pnand %p329, %p330
      %p332 = pneg %p331
      // Predicated region
      $region9: #{tpu_custom_call.1} parent=5 // pred_check
        _
      $region10: #{tpu_custom_call.1} parent=5 // pred_check_branch
        %334 = sbr.rel (%p331) target = $region12
      $region11: #{tpu_custom_call.1} parent=5 // pred_region
        %s335 = ssub.s32 %s22, 1
        // Predicated region
        $region13: #{tpu_custom_call.1} parent=11 // pred_check
          %p336 = pneg %p81
        $region14: #{tpu_custom_call.1} parent=11 // pred_check_branch
          %338 = sbr.rel (%p336) target = $region16
        $region15: #{tpu_custom_call.1} parent=11 // pred_region
          _
        $region16: #{tpu_custom_call.1} parent=11 // pred_fallthru
          _
        // Predicated region
        $region17: #{tpu_custom_call.1} parent=11 // pred_check
          %p339 = pneg %p102
        $region18: #{tpu_custom_call.1} parent=11 // pred_check_branch
          %341 = sbr.rel (%p339) target = $region20
        $region19: #{tpu_custom_call.1} parent=11 // pred_region
          %343 = vsyncadd [#allocation4], 0
          %s345 = sshll.u32 %s2, 4
          %s346 = int_to_ptr.hbm [resolvable:$true] %s345
          %s347 = sshll.u32 [#allocation3], 4
          %s348 = int_to_ptr.vmem [resolvable:$true] %s347
          %350 = dma.hbm_to_vmem [thread:$0]  %s346, 16, %s348, [#allocation4]
        $region20: #{tpu_custom_call.1} parent=11 // pred_fallthru
          _
        // Predicated region
        $region21: #{tpu_custom_call.1} parent=11 // pred_check
          %p351 = pneg %p123
        $region22: #{tpu_custom_call.1} parent=11 // pred_check_branch
          %353 = sbr.rel (%p351) target = $region24
        $region23: #{tpu_custom_call.1} parent=11 // pred_region
          %355 = vsyncadd [#allocation7], 0
          %s357 = sshll.u32 %s3, 4
          %s358 = int_to_ptr.hbm [resolvable:$true] %s357
          %s359 = sshll.u32 [#allocation6], 4
          %s360 = int_to_ptr.vmem [resolvable:$true] %s359
          %362 = dma.hbm_to_vmem [thread:$0]  %s358, 128, %s360, [#allocation7]
        $region24: #{tpu_custom_call.1} parent=11 // pred_fallthru
          _
        // Predicated region
        $region25: #{tpu_custom_call.1} parent=11 // pred_check
          %p363 = pneg %p274
        $region26: #{tpu_custom_call.1} parent=11 // pred_check_branch
          %365 = sbr.rel (%p363) target = $region28
        $region27: #{tpu_custom_call.1} parent=11 // pred_region
          %367 = vsyncadd [#allocation7], 0
          %s368 = sshll.u32 %s9, 4
          %s369 = int_to_ptr.hbm [resolvable:$true] %s368
          %s370 = sshll.u32 [#allocation8], 4
          %s371 = int_to_ptr.vmem [resolvable:$true] %s370
          %376 = dma.hbm_to_vmem [thread:$0]  %s369, 512, %s371, [#allocation7], 128, 128, 8
        $region28: #{tpu_custom_call.1} parent=11 // pred_fallthru
          _
        // Predicated region
        $region29: #{tpu_custom_call.1} parent=11 // pred_check
          %p377 = pneg %p295
        $region30: #{tpu_custom_call.1} parent=11 // pred_check_branch
          %379 = sbr.rel (%p377) target = $region32
        $region31: #{tpu_custom_call.1} parent=11 // pred_region
          _
        $region32: #{tpu_custom_call.1} parent=11 // pred_fallthru
          _
      $region12: #{tpu_custom_call.1} parent=5 // pred_fallthru
        _
      %p380 = scmp.lt.s32.totalorder %s22, 4
      // Predicated region
      $region33: #{tpu_custom_call.1} parent=5 // pred_check
        %p381 = pneg %p380
      $region34: #{tpu_custom_call.1} parent=5 // pred_check_branch
        %383 = sbr.rel (%p381) target = $region36
      $region35: #{tpu_custom_call.1} parent=5 // pred_region
        // Predicated region
        $region37: #{tpu_custom_call.1} parent=35 // pred_check
          %p384 = pneg %p54
        $region38: #{tpu_custom_call.1} parent=35 // pred_check_branch
          %386 = sbr.rel (%p384) target = $region40
        $region39: #{tpu_custom_call.1} parent=35 // pred_region
          %p387 = scmp.lt.s32.totalorder %s29, 1
          %s388 = scalar_select %p387, %s29, 1
          %s389 = smul.addr %s388, 8
          %s390 = scalar_lea.vmem %s0, %s389
        $region40: #{tpu_custom_call.1} parent=35 // pred_fallthru
          _
        // Predicated region
        $region41: #{tpu_custom_call.1} parent=35 // pred_check
          %p391 = pneg %p143
        $region42: #{tpu_custom_call.1} parent=35 // pred_check_branch
          %393 = sbr.rel (%p391) target = $region44
        $region43: #{tpu_custom_call.1} parent=35 // pred_region
          %p394 = scmp.lt.s32.totalorder %s30, 1
          %s395 = scalar_select %p394, %s30, 1
          %s396 = smul.addr %s395, 4
          %s397 = smul.addr %s396, 8
          %s398 = scalar_lea.vmem %s4, %s397
        $region44: #{tpu_custom_call.1} parent=35 // pred_fallthru
          _
        // Predicated region
        $region45: #{tpu_custom_call.1} parent=35 // pred_check
          %p399 = pneg %p169
        $region46: #{tpu_custom_call.1} parent=35 // pred_check_branch
          %401 = sbr.rel (%p399) target = $region48
        $region47: #{tpu_custom_call.1} parent=35 // pred_region
          %p402 = scmp.lt.s32.totalorder %s30, 1
          %s403 = scalar_select %p402, %s30, 1
          %s404 = smul.addr %s403, 4
          %s405 = smul.addr %s404, 8
          %s406 = scalar_lea.vmem %s5, %s405
        $region48: #{tpu_custom_call.1} parent=35 // pred_fallthru
          _
        // Predicated region
        $region49: #{tpu_custom_call.1} parent=35 // pred_check
          %p407 = pneg %p195
        $region50: #{tpu_custom_call.1} parent=35 // pred_check_branch
          %409 = sbr.rel (%p407) target = $region52
        $region51: #{tpu_custom_call.1} parent=35 // pred_region
          %p410 = scmp.lt.s32.totalorder %s30, 1
          %s411 = scalar_select %p410, %s30, 1
          %s412 = smul.addr %s411, 4
          %s413 = smul.addr %s412, 8
          %s414 = scalar_lea.vmem %s6, %s413
        $region52: #{tpu_custom_call.1} parent=35 // pred_fallthru
          _
        // Predicated region
        $region53: #{tpu_custom_call.1} parent=35 // pred_check
          %p415 = pneg %p221
        $region54: #{tpu_custom_call.1} parent=35 // pred_check_branch
          %417 = sbr.rel (%p415) target = $region56
        $region55: #{tpu_custom_call.1} parent=35 // pred_region
          %p418 = scmp.lt.s32.totalorder %s30, 1
          %s419 = scalar_select %p418, %s30, 1
          %s420 = smul.addr %s419, 8
          %s421 = smul.addr %s420, 8
          %s422 = scalar_lea.vmem %s7, %s421
        $region56: #{tpu_custom_call.1} parent=35 // pred_fallthru
          _
        // Predicated region
        $region57: #{tpu_custom_call.1} parent=35 // pred_check
          %p423 = pneg %p247
        $region58: #{tpu_custom_call.1} parent=35 // pred_check_branch
          %425 = sbr.rel (%p423) target = $region60
        $region59: #{tpu_custom_call.1} parent=35 // pred_region
          %p426 = scmp.lt.s32.totalorder %s30, 1
          %s427 = scalar_select %p426, %s30, 1
          %s428 = smul.addr %s427, 8
          %s429 = scalar_lea.vmem %s8, %s428
        $region60: #{tpu_custom_call.1} parent=35 // pred_fallthru
          _
      $region36: #{tpu_custom_call.1} parent=5 // pred_fallthru
        _
      %p430 = scmp.le.s32.totalorder 1, %s22
      %p431 = scmp.lt.s32.totalorder %s22, 5
      %p432 = pnand %p430, %p431
      %p433 = pneg %p432
      // Predicated region
      $region61: #{tpu_custom_call.1} parent=5 // pred_check
        _
      $region62: #{tpu_custom_call.1} parent=5 // pred_check_branch
        %435 = sbr.rel (%p432) target = $region64
      $region63: #{tpu_custom_call.1} parent=5 // pred_region
        %s436 = ssub.s32 %s22, 1
        // Predicated region
        $region65: #{tpu_custom_call.1} parent=63 // pred_check
          %p437 = pneg %p102
        $region66: #{tpu_custom_call.1} parent=63 // pred_check_branch
          %439 = sbr.rel (%p437) target = $region68
        $region67: #{tpu_custom_call.1} parent=63 // pred_region
          %441 = dma.done [#allocation4], 16
        $region68: #{tpu_custom_call.1} parent=63 // pred_fallthru
          _
        // Predicated region
        $region69: #{tpu_custom_call.1} parent=63 // pred_check
          %p442 = pneg %p123
        $region70: #{tpu_custom_call.1} parent=63 // pred_check_branch
          %444 = sbr.rel (%p442) target = $region72
        $region71: #{tpu_custom_call.1} parent=63 // pred_region
          %446 = dma.done [#allocation7], 128
        $region72: #{tpu_custom_call.1} parent=63 // pred_fallthru
          _
        // Predicated region
        $region73: #{tpu_custom_call.1} parent=63 // pred_check
          %p447 = pneg %p274
        $region74: #{tpu_custom_call.1} parent=63 // pred_check_branch
          %449 = sbr.rel (%p447) target = $region76
        $region75: #{tpu_custom_call.1} parent=63 // pred_region
          %451 = dma.done [#allocation7], 512
        $region76: #{tpu_custom_call.1} parent=63 // pred_fallthru
          _
        %p452 = scmp.lt.s32.totalorder %s31, 1
        %s453 = scalar_select %p452, %s31, 1
        %s454 = smul.addr %s453, 8
        %s455 = scalar_lea.vmem %s0, %s454
        %p456 = pneg %p60
        %p457 = pneg %p57
        %p458 = pneg %p81
        %p459 = pneg %p78
        %p460 = pneg %p102
        %p461 = pneg %p99
        %p462 = pneg %p123
        %p463 = pneg %p120
        %p464 = scmp.lt.s32.totalorder %s32, 1
        %s465 = scalar_select %p464, %s32, 1
        %s466 = smul.addr %s465, 4
        %s467 = smul.addr %s466, 8
        %s468 = scalar_lea.vmem %s4, %s467
        %p469 = pneg %p149
        %p470 = pneg %p146
        %p471 = scmp.lt.s32.totalorder %s32, 1
        %s472 = scalar_select %p471, %s32, 1
        %s473 = smul.addr %s472, 4
        %s474 = smul.addr %s473, 8
        %s475 = scalar_lea.vmem %s5, %s474
        %p476 = pneg %p175
        %p477 = pneg %p172
        %p478 = scmp.lt.s32.totalorder %s32, 1
        %s479 = scalar_select %p478, %s32, 1
        %s480 = smul.addr %s479, 4
        %s481 = smul.addr %s480, 8
        %s482 = scalar_lea.vmem %s6, %s481
        %p483 = pneg %p201
        %p484 = pneg %p198
        %p485 = scmp.lt.s32.totalorder %s32, 1
        %s486 = scalar_select %p485, %s32, 1
        %s487 = smul.addr %s486, 8
        %s488 = smul.addr %s487, 8
        %s489 = scalar_lea.vmem %s7, %s488
        %p490 = pneg %p227
        %p491 = pneg %p224
        %p492 = scmp.lt.s32.totalorder %s32, 1
        %s493 = scalar_select %p492, %s32, 1
        %s494 = smul.addr %s493, 8
        %s495 = scalar_lea.vmem %s8, %s494
        %p496 = pneg %p253
        %p497 = pneg %p250
        %p498 = pneg %p274
        %p499 = pneg %p271
        %p500 = pneg %p295
        %p501 = pneg %p292
        %p502 = pneg %p321
        %p503 = pneg %p318
        %s504 = sand.u32 %s308, 1
        %s505 = scalar_lea.sflag [#allocation5], %s504
        %s506 = sand.u32 %s308, 1
        %s507 = scalar_lea.vmem [#allocation9], %s506
        %p508 = scmp.lt.s32.totalorder %s31, 1
        %s509 = scalar_select %p508, %s31, 1
        %s510 = smul.addr %s509, 8
        %s511 = scalar_lea.vmem %s0, %s510
        %p512 = scmp.lt.s32.totalorder %s32, 1
        %s513 = scalar_select %p512, %s32, 1
        %s514 = smul.addr %s513, 4
        %s515 = smul.addr %s514, 8
        %s516 = scalar_lea.vmem %s4, %s515
        %p517 = scmp.lt.s32.totalorder %s32, 1
        %s518 = scalar_select %p517, %s32, 1
        %s519 = smul.addr %s518, 4
        %s520 = smul.addr %s519, 8
        %s521 = scalar_lea.vmem %s5, %s520
        %p522 = scmp.lt.s32.totalorder %s32, 1
        %s523 = scalar_select %p522, %s32, 1
        %s524 = smul.addr %s523, 4
        %s525 = smul.addr %s524, 8
        %s526 = scalar_lea.vmem %s6, %s525
        %p527 = scmp.lt.s32.totalorder %s32, 1
        %s528 = scalar_select %p527, %s32, 1
        %s529 = smul.addr %s528, 8
        %s530 = smul.addr %s529, 8
        %s531 = scalar_lea.vmem %s7, %s530
        %p532 = scmp.lt.s32.totalorder %s32, 1
        %s533 = scalar_select %p532, %s32, 1
        %s534 = smul.addr %s533, 8
        %s535 = scalar_lea.vmem %s8, %s534
        %p536 = scmp.eq.s32.totalorder %s32, 0
        // Predicated region
        $region77: #{tpu_custom_call.1} parent=63 // pred_check
          %p537 = pneg %p536
        $region78: #{tpu_custom_call.1} parent=63 // pred_check_branch
          %539 = sbr.rel (%p537) target = $region80
        $region79: #{tpu_custom_call.1} parent=63 // pred_region
          %v540 = vld [vmem:[%s511] sm:$0xff]
          %v541 = vld [vmem:[%s1] sm:$0x1]
          %543 = vset.pattern.permute.xlu0 0
          %544 = vperm.xlu0 %543, %v540
          %v545 = vpop.permute.xlu0 %544
          %v548 = vperm.slane %v541, 0
          %v550 = vmul.f32 %v545, %v548
          %v551 = vld [vmem:[#allocation3] sm:$0x1]
          %v553 = vperm.slane %v551, 0
          %v555 = vadd.f32 %v550, %v553
          %v556 = vld [vmem:[#allocation6] sm:$0xff]
          %v557 = vadd.f32 %v555, %v556
          %vm558 = vcmask 261120
          %559 = vst.msk [vmem:[#allocation2] sm:$0xff] %vm558, %v557
        $region80: #{tpu_custom_call.1} parent=63 // pred_fallthru
          _
        %v560 = vld [vmem:[#allocation2] sm:$0xff]
        %v561 = vld [vmem:[%s535] sm:$0xff]
        %v562 = vld [vmem:[%s516] sm:$0xff]
        %v563 = vld [vmem:[%s516 + $0x8] sm:$0xff]
        %v564 = vld [vmem:[%s516 + $0x10] sm:$0xff]
        %v565 = vld [vmem:[%s516 + $0x18] sm:$0xff]
        %v566 = vperm.slane %v561, 0
        %vm567 = vcmask 261120
        %v569 = vsel %vm567, %v560, 0
        %571 = vmatpush.msra.mxu0 0.0
        %572 = vmatpush.msra.mxu0 0.0
        %573 = vmatpush.msra.mxu0 0.0
        %574 = vmatpush.msra.mxu0 0.0
        %575 = vmatpush.msra.mxu0 0.0
        %576 = vmatpush.msra.mxu0 0.0
        %577 = vmatpush.msra.mxu0 0.0
        %578 = vmatpush.msra.mxu0 0.0
        %579 = vmatpush.msra.mxu0 0.0
        %580 = vmatpush.msra.mxu0 0.0
        %581 = vmatpush.msra.mxu0 0.0
        %582 = vmatpush.msra.mxu0 0.0
        %583 = vmatpush.msra.mxu0 %v565
        %584 = vmatpush.msra.mxu0 %v564
        %585 = vmatpush.msra.mxu0 %v563
        %586 = vmatpush.msra.mxu0 %v562
        %587 = vmatmul.f32.gmra.mxu0 %v569
        %v588 = vpop.f32.mrf.mxu0
        %v589 = vadd.f32 %v566, %v588
        %590 = vdwg.mxu0
        %592 = vrot.lane.b32.xlu0 %v589, 96
        %v593 = vpop.permute.xlu0 %592
        %vm594 = vcmask 64512
        %v595 = vsel %vm594, %v589, 0
        %v597 = vsel %vm594, %v593, 0
        %599 = vmatpush.xpose.msra.mxu0 0.0
        %600 = vmatpush.xpose.msra.mxu0 0.0
        %601 = vmatpush.xpose.msra.mxu0 0.0
        %602 = vmatpush.xpose.msra.mxu0 0.0
        %603 = vmatpush.xpose.msra.mxu0 0.0
        %604 = vmatpush.xpose.msra.mxu0 0.0
        %605 = vmatpush.xpose.msra.mxu0 0.0
        %606 = vmatpush.xpose.msra.mxu0 0.0
        %607 = vmatpush.xpose.msra.mxu0 0.0
        %608 = vmatpush.xpose.msra.mxu0 0.0
        %609 = vmatpush.xpose.msra.mxu0 0.0
        %610 = vmatpush.xpose.msra.mxu0 0.0
        %611 = vmatpush.xpose.msra.mxu0 0.0
        %612 = vmatpush.xpose.msra.mxu0 0.0
        %613 = vmatpush.xpose.msra.mxu0 0.0
        %614 = vmatpush.xpose.msra.mxu0 %v597
        %615 = vmatmul.f32.gmra.mxu0 %v595
        %v616 = vpop.f32.mrf.mxu0
        %v617 = vadd.f32 0.0, %v616
        %618 = vdwg.mxu0
        %v619 = vmul.f32 %v617, 0.35355338
        %v620 = vsel %vm594, %v619, -inf
        %621 = vmax.xlane.f32.xlu0 %v620
        %v622 = vpop.xlane.xlu0 %621
        %v623 = vsub.f32 %v619, %v622
        %v624 = vmul.f32 %v623, 1.442695
        %v625 = vpow.pop %v624
        %v626 = vsel %vm594, %v625, 0.0
        %627 = vadd.xlane.f32.xlu0 %v626
        %v628 = vpop.xlane.xlu0 %627
        %v629 = vrcp.pop %v628
        %v630 = vmul.f32 %v625, %v629
        %631 = vrot.lane.b32.xlu0 %v589, 64
        %v632 = vpop.permute.xlu0 %631
        %v635 = vsel %vm594, %v630, 0
        %637 = vmatpush.msra.mxu0 0.0
        %638 = vmatpush.msra.mxu0 0.0
        %639 = vmatpush.msra.mxu0 0.0
        %640 = vmatpush.msra.mxu0 0.0
        %641 = vmatpush.msra.mxu0 0.0
        %642 = vmatpush.msra.mxu0 0.0
        %643 = vmatpush.msra.mxu0 0.0
        %644 = vmatpush.msra.mxu0 0.0
        %645 = vmatpush.msra.mxu0 0.0
        %646 = vmatpush.msra.mxu0 0.0
        %647 = vmatpush.msra.mxu0 0.0
        %648 = vmatpush.msra.mxu0 0.0
        %649 = vmatpush.msra.mxu0 0.0
        %650 = vmatpush.msra.mxu0 0.0
        %651 = vmatpush.msra.mxu0 0.0
        %652 = vmatpush.msra.mxu0 %v632
        %653 = vmatmul.f32.gmra.mxu0 %v635
        %v654 = vpop.f32.mrf.mxu0
        %v655 = vadd.f32 0.0, %v654
        %656 = vdwg.mxu0
        %657 = vrot.lane.b32.xlu0 %v589, 120
        %v658 = vpop.permute.xlu0 %657
        %659 = vrot.lane.b32.xlu0 %v589, 88
        %v660 = vpop.permute.xlu0 %659
        %v661 = vsel %vm594, %v658, 0
        %v663 = vsel %vm594, %v660, 0
        %665 = vmatpush.xpose.msra.mxu0 0.0
        %666 = vmatpush.xpose.msra.mxu0 0.0
        %667 = vmatpush.xpose.msra.mxu0 0.0
        %668 = vmatpush.xpose.msra.mxu0 0.0
        %669 = vmatpush.xpose.msra.mxu0 0.0
        %670 = vmatpush.xpose.msra.mxu0 0.0
        %671 = vmatpush.xpose.msra.mxu0 0.0
        %672 = vmatpush.xpose.msra.mxu0 0.0
        %673 = vmatpush.xpose.msra.mxu0 0.0
        %674 = vmatpush.xpose.msra.mxu0 0.0
        %675 = vmatpush.xpose.msra.mxu0 0.0
        %676 = vmatpush.xpose.msra.mxu0 0.0
        %677 = vmatpush.xpose.msra.mxu0 0.0
        %678 = vmatpush.xpose.msra.mxu0 0.0
        %679 = vmatpush.xpose.msra.mxu0 0.0
        %680 = vmatpush.xpose.msra.mxu0 %v663
        %681 = vmatmul.f32.gmra.mxu0 %v661
        %v682 = vpop.f32.mrf.mxu0
        %v683 = vadd.f32 0.0, %v682
        %684 = vdwg.mxu0
        %v685 = vmul.f32 %v683, 0.35355338
        %v686 = vsel %vm594, %v685, -inf
        %687 = vmax.xlane.f32.xlu0 %v686
        %v688 = vpop.xlane.xlu0 %687
        %v689 = vsub.f32 %v685, %v688
        %v690 = vmul.f32 %v689, 1.442695
        %v691 = vpow.pop %v690
        %v692 = vsel %vm594, %v691, 0.0
        %693 = vadd.xlane.f32.xlu0 %v692
        %v694 = vpop.xlane.xlu0 %693
        %v695 = vrcp.pop %v694
        %v696 = vmul.f32 %v691, %v695
        %697 = vrot.lane.b32.xlu0 %v589, 56
        %v698 = vpop.permute.xlu0 %697
        %v701 = vsel %vm594, %v696, 0
        %703 = vmatpush.msra.mxu0 0.0
        %704 = vmatpush.msra.mxu0 0.0
        %705 = vmatpush.msra.mxu0 0.0
        %706 = vmatpush.msra.mxu0 0.0
        %707 = vmatpush.msra.mxu0 0.0
        %708 = vmatpush.msra.mxu0 0.0
        %709 = vmatpush.msra.mxu0 0.0
        %710 = vmatpush.msra.mxu0 0.0
        %711 = vmatpush.msra.mxu0 0.0
        %712 = vmatpush.msra.mxu0 0.0
        %713 = vmatpush.msra.mxu0 0.0
        %714 = vmatpush.msra.mxu0 0.0
        %715 = vmatpush.msra.mxu0 0.0
        %716 = vmatpush.msra.mxu0 0.0
        %717 = vmatpush.msra.mxu0 0.0
        %718 = vmatpush.msra.mxu0 %v698
        %719 = vmatmul.f32.gmra.mxu0 %v701
        %v720 = vpop.f32.mrf.mxu0
        %v721 = vadd.f32 0.0, %v720
        %722 = vdwg.mxu0
        %723 = vrot.lane.b32.xlu0 %v589, 112
        %v724 = vpop.permute.xlu0 %723
        %725 = vrot.lane.b32.xlu0 %v589, 80
        %v726 = vpop.permute.xlu0 %725
        %v727 = vsel %vm594, %v724, 0
        %v729 = vsel %vm594, %v726, 0
        %731 = vmatpush.xpose.msra.mxu0 0.0
        %732 = vmatpush.xpose.msra.mxu0 0.0
        %733 = vmatpush.xpose.msra.mxu0 0.0
        %734 = vmatpush.xpose.msra.mxu0 0.0
        %735 = vmatpush.xpose.msra.mxu0 0.0
        %736 = vmatpush.xpose.msra.mxu0 0.0
        %737 = vmatpush.xpose.msra.mxu0 0.0
        %738 = vmatpush.xpose.msra.mxu0 0.0
        %739 = vmatpush.xpose.msra.mxu0 0.0
        %740 = vmatpush.xpose.msra.mxu0 0.0
        %741 = vmatpush.xpose.msra.mxu0 0.0
        %742 = vmatpush.xpose.msra.mxu0 0.0
        %743 = vmatpush.xpose.msra.mxu0 0.0
        %744 = vmatpush.xpose.msra.mxu0 0.0
        %745 = vmatpush.xpose.msra.mxu0 0.0
        %746 = vmatpush.xpose.msra.mxu0 %v729
        %747 = vmatmul.f32.gmra.mxu0 %v727
        %v748 = vpop.f32.mrf.mxu0
        %v749 = vadd.f32 0.0, %v748
        %750 = vdwg.mxu0
        %v751 = vmul.f32 %v749, 0.35355338
        %v752 = vsel %vm594, %v751, -inf
        %753 = vmax.xlane.f32.xlu0 %v752
        %v754 = vpop.xlane.xlu0 %753
        %v755 = vsub.f32 %v751, %v754
        %v756 = vmul.f32 %v755, 1.442695
        %v757 = vpow.pop %v756
        %v758 = vsel %vm594, %v757, 0.0
        %759 = vadd.xlane.f32.xlu0 %v758
        %v760 = vpop.xlane.xlu0 %759
        %v761 = vrcp.pop %v760
        %v762 = vmul.f32 %v757, %v761
        %763 = vrot.lane.b32.xlu0 %v589, 48
        %v764 = vpop.permute.xlu0 %763
        %v767 = vsel %vm594, %v762, 0
        %769 = vmatpush.msra.mxu0 0.0
        %770 = vmatpush.msra.mxu0 0.0
        %771 = vmatpush.msra.mxu0 0.0
        %772 = vmatpush.msra.mxu0 0.0
        %773 = vmatpush.msra.mxu0 0.0
        %774 = vmatpush.msra.mxu0 0.0
        %775 = vmatpush.msra.mxu0 0.0
        %776 = vmatpush.msra.mxu0 0.0
        %777 = vmatpush.msra.mxu0 0.0
        %778 = vmatpush.msra.mxu0 0.0
        %779 = vmatpush.msra.mxu0 0.0
        %780 = vmatpush.msra.mxu0 0.0
        %781 = vmatpush.msra.mxu0 0.0
        %782 = vmatpush.msra.mxu0 0.0
        %783 = vmatpush.msra.mxu0 0.0
        %784 = vmatpush.msra.mxu0 %v764
        %785 = vmatmul.f32.gmra.mxu0 %v767
        %v786 = vpop.f32.mrf.mxu0
        %v787 = vadd.f32 0.0, %v786
        %788 = vdwg.mxu0
        %789 = vrot.lane.b32.xlu0 %v589, 104
        %v790 = vpop.permute.xlu0 %789
        %791 = vrot.lane.b32.xlu0 %v589, 72
        %v792 = vpop.permute.xlu0 %791
        %v793 = vsel %vm594, %v790, 0
        %v795 = vsel %vm594, %v792, 0
        %797 = vmatpush.xpose.msra.mxu0 0.0
        %798 = vmatpush.xpose.msra.mxu0 0.0
        %799 = vmatpush.xpose.msra.mxu0 0.0
        %800 = vmatpush.xpose.msra.mxu0 0.0
        %801 = vmatpush.xpose.msra.mxu0 0.0
        %802 = vmatpush.xpose.msra.mxu0 0.0
        %803 = vmatpush.xpose.msra.mxu0 0.0
        %804 = vmatpush.xpose.msra.mxu0 0.0
        %805 = vmatpush.xpose.msra.mxu0 0.0
        %806 = vmatpush.xpose.msra.mxu0 0.0
        %807 = vmatpush.xpose.msra.mxu0 0.0
        %808 = vmatpush.xpose.msra.mxu0 0.0
        %809 = vmatpush.xpose.msra.mxu0 0.0
        %810 = vmatpush.xpose.msra.mxu0 0.0
        %811 = vmatpush.xpose.msra.mxu0 0.0
        %812 = vmatpush.xpose.msra.mxu0 %v795
        %813 = vmatmul.f32.gmra.mxu0 %v793
        %v814 = vpop.f32.mrf.mxu0
        %v815 = vadd.f32 0.0, %v814
        %816 = vdwg.mxu0
        %v817 = vmul.f32 %v815, 0.35355338
        %v818 = vsel %vm594, %v817, -inf
        %819 = vmax.xlane.f32.xlu0 %v818
        %v820 = vpop.xlane.xlu0 %819
        %v821 = vsub.f32 %v817, %v820
        %v822 = vmul.f32 %v821, 1.442695
        %v823 = vpow.pop %v822
        %v824 = vsel %vm594, %v823, 0.0
        %825 = vadd.xlane.f32.xlu0 %v824
        %v826 = vpop.xlane.xlu0 %825
        %v827 = vrcp.pop %v826
        %v828 = vmul.f32 %v823, %v827
        %829 = vrot.lane.b32.xlu0 %v589, 40
        %v830 = vpop.permute.xlu0 %829
        %v833 = vsel %vm594, %v828, 0
        %835 = vmatpush.msra.mxu0 0.0
        %836 = vmatpush.msra.mxu0 0.0
        %837 = vmatpush.msra.mxu0 0.0
        %838 = vmatpush.msra.mxu0 0.0
        %839 = vmatpush.msra.mxu0 0.0
        %840 = vmatpush.msra.mxu0 0.0
        %841 = vmatpush.msra.mxu0 0.0
        %842 = vmatpush.msra.mxu0 0.0
        %843 = vmatpush.msra.mxu0 0.0
        %844 = vmatpush.msra.mxu0 0.0
        %845 = vmatpush.msra.mxu0 0.0
        %846 = vmatpush.msra.mxu0 0.0
        %847 = vmatpush.msra.mxu0 0.0
        %848 = vmatpush.msra.mxu0 0.0
        %849 = vmatpush.msra.mxu0 0.0
        %850 = vmatpush.msra.mxu0 %v830
        %851 = vmatmul.f32.gmra.mxu0 %v833
        %v852 = vpop.f32.mrf.mxu0
        %v853 = vadd.f32 0.0, %v852
        %854 = vdwg.mxu0
        %856 = vrot.lane.b32.xlu0 %v721, 8
        %v857 = vpop.permute.xlu0 %856
        %860 = vrot.lane.b32.xlu0 %v787, 16
        %v861 = vpop.permute.xlu0 %860
        %864 = vrot.lane.b32.xlu0 %v853, 24
        %v865 = vpop.permute.xlu0 %864
        %v867 = vsel %vm594, %v655, %v857
        %vm868 = vcmask 130048
        %v869 = vsel %vm868, %v867, %v861
        %vm870 = vcmask 195584
        %v871 = vsel %vm870, %v869, %v865
        %v872 = vld [vmem:[%s521] sm:$0xff]
        %v873 = vld [vmem:[%s521 + $0x8] sm:$0xff]
        %v874 = vld [vmem:[%s521 + $0x10] sm:$0xff]
        %v875 = vld [vmem:[%s521 + $0x18] sm:$0xff]
        %v876 = vperm.slane %v561, 2
        %v878 = vsel %vm567, %v871, 0
        %880 = vmatpush.msra.mxu0 0.0
        %881 = vmatpush.msra.mxu0 0.0
        %882 = vmatpush.msra.mxu0 0.0
        %883 = vmatpush.msra.mxu0 0.0
        %884 = vmatpush.msra.mxu0 0.0
        %885 = vmatpush.msra.mxu0 0.0
        %886 = vmatpush.msra.mxu0 0.0
        %887 = vmatpush.msra.mxu0 0.0
        %888 = vmatpush.msra.mxu0 0.0
        %889 = vmatpush.msra.mxu0 0.0
        %890 = vmatpush.msra.mxu0 0.0
        %891 = vmatpush.msra.mxu0 0.0
        %892 = vmatpush.msra.mxu0 %v875
        %893 = vmatpush.msra.mxu0 %v874
        %894 = vmatpush.msra.mxu0 %v873
        %895 = vmatpush.msra.mxu0 %v872
        %896 = vmatmul.f32.gmra.mxu0 %v878
        %v897 = vpop.f32.mrf.mxu0
        %v898 = vadd.f32 %v876, %v897
        %899 = vdwg.mxu0
        %v900 = vadd.f32 %v560, %v898
        %v901 = vsel %vm567, %v900, 0.0
        %902 = vadd.xlane.f32.xlu0 %v901
        %v903 = vpop.xlane.xlu0 %902
        %v904 = vrcp.pop 32.0
        %v905 = vmul.f32 32.0, %v904
        %v906 = vsub.f32 1.0, %v905
        %v907 = vmul.f32 %v904, %v906
        %v908 = vadd.f32 %v904, %v907
        %vm909 = vweird.f32 %v904
        %v910 = vsel %vm909, %v904, %v908
        %v911 = vmul.f32 %v903, %v910
        %v912 = vsub.f32 %v900, %v911
        %v913 = vmul.f32 %v912, %v912
        %v914 = vsel %vm567, %v913, 0.0
        %915 = vadd.xlane.f32.xlu0 %v914
        %v916 = vpop.xlane.xlu0 %915
        %v917 = vmul.f32 %v916, %v910
        %v918 = vadd.f32 %v917, 1e-05
        %v919 = vrsqrt.pop %v918
        %v920 = vmul.f32 %v919, %v918
        %v921 = vmul.f32 %v920, %v919
        %v922 = vmul.f32 0.5, %v921
        %v923 = vsub.f32 1.5, %v922
        %v924 = vmul.f32 %v919, %v923
        %vm925 = vweird.f32 %v918
        %vm926 = vweird.f32 %v919
        %vm927 = vmor %vm925, %vm926
        %v928 = vsel %vm927, %v919, %v924
        %v929 = vmul.f32 %v912, %v928
        %v930 = vperm.slane %v561, 4
        %v931 = vmul.f32 %v929, %v930
        %v932 = vperm.slane %v561, 5
        %v933 = vadd.f32 %v931, %v932
        %v934 = vld [vmem:[%s526] sm:$0xff]
        %v935 = vld [vmem:[%s526 + $0x8] sm:$0xff]
        %v936 = vld [vmem:[%s526 + $0x10] sm:$0xff]
        %v937 = vld [vmem:[%s526 + $0x18] sm:$0xff]
        %v938 = vperm.slane %v561, 1
        %v940 = vsel %vm567, %v933, 0
        %942 = vmatpush.msra.mxu0 0.0
        %943 = vmatpush.msra.mxu0 0.0
        %944 = vmatpush.msra.mxu0 0.0
        %945 = vmatpush.msra.mxu0 0.0
        %946 = vmatpush.msra.mxu0 0.0
        %947 = vmatpush.msra.mxu0 0.0
        %948 = vmatpush.msra.mxu0 0.0
        %949 = vmatpush.msra.mxu0 0.0
        %950 = vmatpush.msra.mxu0 0.0
        %951 = vmatpush.msra.mxu0 0.0
        %952 = vmatpush.msra.mxu0 0.0
        %953 = vmatpush.msra.mxu0 0.0
        %954 = vmatpush.msra.mxu0 %v937
        %955 = vmatpush.msra.mxu0 %v936
        %956 = vmatpush.msra.mxu0 %v935
        %957 = vmatpush.msra.mxu0 %v934
        %958 = vmatmul.f32.gmra.mxu0 %v940
        %v959 = vpop.f32.mrf.mxu0
        %v960 = vadd.f32 %v938, %v959
        %961 = vdwg.mxu0
        %v962 = vmax.f32 %v960, 0.0
        %v963 = vld [vmem:[%s531] sm:$0xff]
        %v964 = vld [vmem:[%s531 + $0x8] sm:$0xff]
        %v965 = vld [vmem:[%s531 + $0x10] sm:$0xff]
        %v966 = vld [vmem:[%s531 + $0x18] sm:$0xff]
        %v967 = vld [vmem:[%s531 + $0x20] sm:$0xff]
        %v968 = vld [vmem:[%s531 + $0x28] sm:$0xff]
        %v969 = vld [vmem:[%s531 + $0x30] sm:$0xff]
        %v970 = vld [vmem:[%s531 + $0x38] sm:$0xff]
        %v971 = vperm.slane %v561, 3
        %vm972 = vcmask 523264
        %v974 = vsel %vm972, %v962, 0
        %976 = vmatpush.msra.mxu0 0.0
        %977 = vmatpush.msra.mxu0 0.0
        %978 = vmatpush.msra.mxu0 0.0
        %979 = vmatpush.msra.mxu0 0.0
        %980 = vmatpush.msra.mxu0 0.0
        %981 = vmatpush.msra.mxu0 0.0
        %982 = vmatpush.msra.mxu0 0.0
        %983 = vmatpush.msra.mxu0 0.0
        %984 = vmatpush.msra.mxu0 %v970
        %985 = vmatpush.msra.mxu0 %v969
        %986 = vmatpush.msra.mxu0 %v968
        %987 = vmatpush.msra.mxu0 %v967
        %988 = vmatpush.msra.mxu0 %v966
        %989 = vmatpush.msra.mxu0 %v965
        %990 = vmatpush.msra.mxu0 %v964
        %991 = vmatpush.msra.mxu0 %v963
        %992 = vmatmul.f32.gmra.mxu0 %v974
        %v993 = vpop.f32.mrf.mxu0
        %v994 = vadd.f32 %v971, %v993
        %995 = vdwg.mxu0
        %v996 = vadd.f32 %v933, %v994
        %v997 = vsel %vm567, %v996, 0.0
        %998 = vadd.xlane.f32.xlu0 %v997
        %v999 = vpop.xlane.xlu0 %998
        %v1000 = vmul.f32 %v999, %v910
        %v1001 = vsub.f32 %v996, %v1000
        %v1002 = vmul.f32 %v1001, %v1001
        %v1003 = vsel %vm567, %v1002, 0.0
        %1004 = vadd.xlane.f32.xlu0 %v1003
        %v1005 = vpop.xlane.xlu0 %1004
        %v1006 = vmul.f32 %v1005, %v910
        %v1007 = vadd.f32 %v1006, 1e-05
        %v1008 = vrsqrt.pop %v1007
        %v1009 = vmul.f32 %v1008, %v1007
        %v1010 = vmul.f32 %v1009, %v1008
        %v1011 = vmul.f32 0.5, %v1010
        %v1012 = vsub.f32 1.5, %v1011
        %v1013 = vmul.f32 %v1008, %v1012
        %vm1014 = vweird.f32 %v1007
        %vm1015 = vweird.f32 %v1008
        %vm1016 = vmor %vm1014, %vm1015
        %v1017 = vsel %vm1016, %v1008, %v1013
        %v1018 = vmul.f32 %v1001, %v1017
        %v1019 = vperm.slane %v561, 6
        %v1020 = vmul.f32 %v1018, %v1019
        %v1021 = vperm.slane %v561, 7
        %v1022 = vadd.f32 %v1020, %v1021
        %1023 = vst.msk [vmem:[#allocation2] sm:$0xff] %vm567, %v1022
        %p1024 = scmp.eq.s32.totalorder %s32, 1
        // Predicated region
        $region81: #{tpu_custom_call.1} parent=63 // pred_check
          %p1025 = pneg %p1024
        $region82: #{tpu_custom_call.1} parent=63 // pred_check_branch
          %1027 = sbr.rel (%p1025) target = $region84
        $region83: #{tpu_custom_call.1} parent=63 // pred_region
          %v1028 = vsel %vm567, %v1022, 0.0
          %v1029 = vrot.slane %v1028, 4
          %v1030 = vadd.f32 %v1028, %v1029
          %v1031 = vrot.slane %v1030, 2
          %v1032 = vadd.f32 %v1030, %v1031
          %v1033 = vrot.slane %v1032, 1
          %v1034 = vadd.f32 %v1032, %v1033
          %v1035 = vrcp.pop 8.0
          %v1036 = vmul.f32 8.0, %v1035
          %v1037 = vsub.f32 1.0, %v1036
          %v1038 = vmul.f32 %v1035, %v1037
          %v1039 = vadd.f32 %v1035, %v1038
          %vm1040 = vweird.f32 %v1035
          %v1041 = vsel %vm1040, %v1035, %v1039
          %v1042 = vmul.f32 %v1034, %v1041
          %v1043 = vld [vmem:[#allocation8] sm:$0xff]
          %v1044 = vld [vmem:[#allocation8 + $0x8] sm:$0xff]
          %v1045 = vld [vmem:[#allocation8 + $0x10] sm:$0xff]
          %v1046 = vld [vmem:[#allocation8 + $0x18] sm:$0xff]
          %v1047 = vld [vmem:[%s10] sm:$0x1]
          %v1049 = vsel %vm567, %v1042, 0
          %1051 = vmatpush.msra.mxu0 0.0
          %1052 = vmatpush.msra.mxu0 0.0
          %1053 = vmatpush.msra.mxu0 0.0
          %1054 = vmatpush.msra.mxu0 0.0
          %1055 = vmatpush.msra.mxu0 0.0
          %1056 = vmatpush.msra.mxu0 0.0
          %1057 = vmatpush.msra.mxu0 0.0
          %1058 = vmatpush.msra.mxu0 0.0
          %1059 = vmatpush.msra.mxu0 0.0
          %1060 = vmatpush.msra.mxu0 0.0
          %1061 = vmatpush.msra.mxu0 0.0
          %1062 = vmatpush.msra.mxu0 0.0
          %1063 = vmatpush.msra.mxu0 %v1046
          %1064 = vmatpush.msra.mxu0 %v1045
          %1065 = vmatpush.msra.mxu0 %v1044
          %1066 = vmatpush.msra.mxu0 %v1043
          %1067 = vmatmul.f32.gmra.mxu0 %v1049
          %v1068 = vpop.f32.mrf.mxu0
          %v1069 = vadd.f32 %v1047, %v1068
          %1070 = vdwg.mxu0
          %1071 = vst [vmem:[%s507] sm:$0x1] %v1069
        $region84: #{tpu_custom_call.1} parent=63 // pred_fallthru
          _
        %s1072 = sand.u32 %s308, 1
        %s1073 = scalar_lea.sflag [#allocation5], %s1072
        %s1074 = sand.u32 %s308, 1
        %s1075 = scalar_lea.vmem [#allocation9], %s1074
        // Predicated region
        $region85: #{tpu_custom_call.1} parent=63 // pred_check
          %p1076 = pneg %p318
        $region86: #{tpu_custom_call.1} parent=63 // pred_check_branch
          %1078 = sbr.rel (%p1076) target = $region88
        $region87: #{tpu_custom_call.1} parent=63 // pred_region
          %1080 = vsyncadd %s1073, 0
          %s1081 = scalar_lea.hbm %s11, %s31
          %s1083 = sshll.u32 %s1075, 4
          %s1084 = int_to_ptr.vmem [resolvable:$true] %s1083
          %s1085 = sshll.u32 %s1081, 4
          %s1086 = int_to_ptr.hbm [resolvable:$true] %s1085
          %1088 = dma.vmem_to_hbm [thread:$0]  %s1084, 16, %s1086, %s1073
        $region88: #{tpu_custom_call.1} parent=63 // pred_fallthru
          _
      $region64: #{tpu_custom_call.1} parent=5 // pred_fallthru
        _
      %p1089 = scmp.le.s32.totalorder 2, %s22
      // Predicated region
      $region89: #{tpu_custom_call.1} parent=5 // pred_check
        %p1090 = pneg %p1089
      $region90: #{tpu_custom_call.1} parent=5 // pred_check_branch
        %1092 = sbr.rel (%p1090) target = $region92
      $region91: #{tpu_custom_call.1} parent=5 // pred_region
        %s1093 = ssub.s32 %s22, 2
        // Predicated region
        $region93: #{tpu_custom_call.1} parent=91 // pred_check
          %p1094 = pneg %p324
        $region94: #{tpu_custom_call.1} parent=91 // pred_check_branch
          %1096 = sbr.rel (%p1094) target = $region96
        $region95: #{tpu_custom_call.1} parent=91 // pred_region
          %s1097 = sand.u32 %s309, 1
          %s1098 = scalar_lea.sflag [#allocation5], %s1097
          %s1099 = sand.u32 %s309, 1
          %s1100 = scalar_lea.vmem [#allocation9], %s1099
          %1102 = dma.done %s1098, 16
        $region96: #{tpu_custom_call.1} parent=91 // pred_fallthru
          _
      $region92: #{tpu_custom_call.1} parent=5 // pred_fallthru
        _
    $region6: #{tpu_custom_call.1} parent=1 // loop_footer
      %s26 = sadd.s32 1, %s22
    $region7: #{tpu_custom_call.1} parent=1 // loop_footer_branch
      %21 = sbr.rel target = $region3
    $region8: #{tpu_custom_call.1} parent=1 // loop_exit
      _
    %1103 = vsyncpa [#allocation4], 1
    %s1104 = scalar_lea.sflag [#allocation4], 1
    %1105 = vsyncpa %s1104, 1
    %1106 = vsyncpa [#allocation7], 1
    %1107 = vsyncpa [#allocation5], 1
    %s1108 = scalar_lea.sflag [#allocation5], 1
    %1109 = vsyncpa %s1108, 1

</llo_original>
